<compile_context>
chip_gen: v7x
topology: tpu7x:2x2x1
jax: 0.10.0
libtpu: 0.0.40
codegen_flags: <defaults>
</compile_context>

<pallas_src>
import math
import functools

import jax
import jax.numpy as jnp
from jax import lax
from jax.experimental import pallas as pl
from jax.experimental.pallas import tpu as pltpu


_INV_SQRT2 = 1.0 / math.sqrt(2.0)


def _vmem_limit_bytes():
    """Generation-aware scoped-VMEM limit: ~85% of physical, capped at 110 MiB."""
    cap = None
    try:
        info = pltpu.get_tpu_info()
        cap = getattr(info, "vmem_capacity_bytes", None)
    except Exception:
        cap = None
    if not cap:
        cap = 128 * 1024 * 1024          # conservative default (v5e/v6e physical)
    return min(int(cap * 0.85), 110 * 1024 * 1024)


def _layernorm(h, w, b, eps=1e-5):
    """LayerNorm in f32. h: (t, C); w, b: (C,)."""
    mu = jnp.mean(h, axis=-1, keepdims=True)
    c = h - mu
    var = jnp.mean(c * c, axis=-1, keepdims=True)
    return c * lax.rsqrt(var + eps) * w + b


# --------------------------------------------------------------------------------------
# Kernel 1: ln_1 + fused QKV projection -> head-major q, k, v  (scale folded into q)
# --------------------------------------------------------------------------------------
def ln1_qkv_kernel(x_ref, ln1w_ref, ln1b_ref, wqkv_ref, bqkv_ref,
                   q_ref, k_ref, v_ref, *, n_head, scale):
    t = x_ref.shape[1]
    C = x_ref.shape[2]
    hd = C // n_head

    x = x_ref[0].astype(jnp.float32)                                    # (t, C)
    h = _layernorm(x, ln1w_ref[0], ln1b_ref[0]).astype(jnp.bfloat16)

    # One fused (t, C) x (C, 3C) MXU push instead of three (C, C) matmuls.
    qkv = jnp.dot(h, wqkv_ref[...], preferred_element_type=jnp.float32) + bqkv_ref[0]

    def to_heads(p, s, out_ref):
        if s != 1.0:
            p = p * s                                                    # fold 1/sqrt(hd) into q
        p = p.astype(jnp.bfloat16).reshape(t, n_head, hd)                # cast BEFORE relayout
        out_ref[0] = jnp.transpose(p, (1, 0, 2))                         # (H, t, hd) bf16

    to_heads(qkv[:, :C], scale, q_ref)
    to_heads(qkv[:, C:2 * C], 1.0, k_ref)
    to_heads(qkv[:, 2 * C:], 1.0, v_ref)


# --------------------------------------------------------------------------------------
# Kernel 2: causal flash attention on a lower-triangular (qi, ki) step grid
# --------------------------------------------------------------------------------------
def flash_attn_kernel(qi_tab_ref, ki_tab_ref, q_ref, k_ref, v_ref, o_ref,
                      m_sc, l_sc, acc_sc):
    s_idx = pl.program_id(2)
    qi = qi_tab_ref[s_idx]
    ki = ki_tab_ref[s_idx]
    tq = q_ref.shape[2]
    tk = k_ref.shape[2]

    @pl.when(ki == 0)
    def _init():
        m_sc[...] = jnp.full(m_sc.shape, -jnp.inf, dtype=m_sc.dtype)
        l_sc[...] = jnp.zeros(l_sc.shape, dtype=l_sc.dtype)
        acc_sc[...] = jnp.zeros(acc_sc.shape, dtype=acc_sc.dtype)

    def scores():
        # q is pre-scaled by 1/sqrt(hd); bf16 x bf16, f32 accumulation.
        return lax.dot_general(q_ref[0, 0], k_ref[0, 0], (((1,), (1,)), ((), ())),
                               preferred_element_type=jnp.float32)       # (tq, tk) f32

    def online_softmax_update(s):
        m_prev = m_sc[...]                                               # (tq, 1)
        m_new = jnp.maximum(m_prev, jnp.max(s, axis=-1, keepdims=True))
        alpha = jnp.exp(m_prev - m_new)
        p = jnp.exp(s - m_new)                                           # (tq, tk) f32
        l_sc[...] = alpha * l_sc[...] + jnp.sum(p, axis=-1, keepdims=True)
        acc_sc[...] = alpha * acc_sc[...] + jnp.dot(
            p.astype(v_ref.dtype), v_ref[0, 0],
            preferred_element_type=jnp.float32)                          # (tq, hd) f32
        m_sc[...] = m_new

    @pl.when(ki < qi)   # strictly below the diagonal: no masking needed
    def _below():
        online_softmax_update(scores())

    @pl.when(ki == qi)  # diagonal tile: mask, update, then finalize (last step for this qi)
    def _diag():
        s = scores()
        # tq == tk and qi == ki, so the global tile offsets cancel: local row >= local col.
        row = lax.broadcasted_iota(jnp.int32, (tq, tk), 0)
        col = lax.broadcasted_iota(jnp.int32, (tq, tk), 1)
        s = jnp.where(row >= col, s, -1e30)
        online_softmax_update(s)
        inv_l = pl.reciprocal(l_sc[...], approx=True)                    # EUP, near-free
        o_ref[0, 0] = (acc_sc[...] * inv_l).astype(o_ref.dtype)


# --------------------------------------------------------------------------------------
# Kernel 3: attention c_proj + residual + ln_2 + MLP (fc -> exact GELU -> proj) + residual
# --------------------------------------------------------------------------------------
def proj_mlp_kernel(y_ref, x_ref, wo_ref, bo_ref, ln2w_ref, ln2b_ref,
                    wfc_ref, bfc_ref, wpr_ref, bpr_ref, o_ref):
    t = x_ref.shape[1]
    C = x_ref.shape[2]

    x = x_ref[0].astype(jnp.float32)                                     # (t, C)

    # merge heads: (H, t, hd) -> (t, C); relayout done directly on the bf16 data.
    y = jnp.transpose(y_ref[0], (1, 0, 2)).reshape(t, C)                 # bf16
    y = jnp.dot(y, wo_ref[...], preferred_element_type=jnp.float32) + bo_ref[0]
    x1 = x + y                                                           # residual in f32

    h2 = _layernorm(x1, ln2w_ref[0], ln2b_ref[0]).astype(jnp.bfloat16)
    f = jnp.dot(h2, wfc_ref[...], preferred_element_type=jnp.float32) + bfc_ref[0]
    g = 0.5 * f * (1.0 + lax.erf(f * _INV_SQRT2))                        # exact GELU, f32
    m = jnp.dot(g.astype(jnp.bfloat16), wpr_ref[...],
                preferred_element_type=jnp.float32) + bpr_ref[0]

    o_ref[0] = (x1 + m).astype(o_ref.dtype)


# --------------------------------------------------------------------------------------
# Wrapper
# --------------------------------------------------------------------------------------
def _transformer_block_impl(x, params, *, n_head, block_seq, single_buffer_weights):
    B, T, C = x.shape
    H = n_head
    assert C % H == 0, "n_embd must be divisible by n_head"
    hd = C // H

    t = T if T <= block_seq else block_seq       # one tile size for q and kv tiles
    assert T % t == 0, "T must be divisible by the sequence tile"
    nt = T // t

    scale = 1.0 / math.sqrt(hd)
    f32, bf16 = jnp.float32, jnp.bfloat16
    vmem_limit = _vmem_limit_bytes()

    # One-time weight prep (outside the kernels): cast matmul weights to bf16, keep QKV fused.
    wqkv = params["w_qkv"].astype(bf16)          # (C, 3C)
    bqkv = params["b_qkv"].astype(f32)           # (1, 3C)
    wo = params["w_o"].astype(bf16)
    wfc = params["w_fc"].astype(bf16)
    wpr = params["w_pr"].astype(bf16)

    def const_spec(shape):
        index_map = lambda b, i: (0,) * len(shape)
        if single_buffer_weights:
            # Constant index_map -> the block is DMA'd once; single-buffer it to halve VMEM.
            return pl.BlockSpec(shape, index_map, pipeline_mode=pl.Buffered(1))
        return pl.BlockSpec(shape, index_map)

    # ---- Kernel 1: ln_1 + fused QKV projection -> head-major (B, H, T, hd) bf16 ----
    q, k, v = pl.pallas_call(
        functools.partial(ln1_qkv_kernel, n_head=H, scale=scale),
        out_shape=tuple(jax.ShapeDtypeStruct((B, H, T, hd), bf16) for _ in range(3)),
        grid=(B, nt),
        in_specs=[
            pl.BlockSpec((1, t, C), lambda b, i: (b, i, 0)),             # x
            const_spec((1, C)), const_spec((1, C)),                      # ln1 w, b
            const_spec((C, 3 * C)), const_spec((1, 3 * C)),              # fused Wqkv, bqkv
        ],
        out_specs=tuple(pl.BlockSpec((1, H, t, hd), lambda b, i: (b, 0, i, 0))
                        for _ in range(3)),
        compiler_params=pltpu.CompilerParams(
            dimension_semantics=("parallel", "parallel"),
            vmem_limit_bytes=vmem_limit),
    )(x, params["ln1_w"], params["ln1_b"], wqkv, bqkv)

    # ---- Kernel 2: causal flash attention on the lower-triangular step grid ----
    qi_list, ki_list = [], []
    for qi in range(nt):
        for ki in range(qi + 1):                 # ki == qi is the LAST step of each qi row
            qi_list.append(qi)
            ki_list.append(ki)
    qi_tab = jnp.asarray(qi_list, dtype=jnp.int32)
    ki_tab = jnp.asarray(ki_list, dtype=jnp.int32)
    n_steps = len(qi_list)                       # nt * (nt + 1) / 2

    y_attn = pl.pallas_call(
        flash_attn_kernel,
        out_shape=jax.ShapeDtypeStruct((B, H, T, hd), bf16),
        grid_spec=pltpu.PrefetchScalarGridSpec(
            num_scalar_prefetch=2,
            grid=(B, H, n_steps),
            in_specs=[
                pl.BlockSpec((1, 1, t, hd),
                             lambda b, h, s, qi_t, ki_t: (b, h, qi_t[s], 0)),   # q
                pl.BlockSpec((1, 1, t, hd),
                             lambda b, h, s, qi_t, ki_t: (b, h, ki_t[s], 0)),   # k
                pl.BlockSpec((1, 1, t, hd),
                             lambda b, h, s, qi_t, ki_t: (b, h, ki_t[s], 0)),   # v
            ],
            out_specs=pl.BlockSpec((1, 1, t, hd),
                                   lambda b, h, s, qi_t, ki_t: (b, h, qi_t[s], 0)),
            scratch_shapes=[
                pltpu.VMEM((t, 1), f32),         # running max m
                pltpu.VMEM((t, 1), f32),         # running denom l
                pltpu.VMEM((t, hd), f32),        # output accumulator
            ]),
        compiler_params=pltpu.CompilerParams(
            dimension_semantics=("parallel", "parallel", "arbitrary"),
            vmem_limit_bytes=vmem_limit),
    )(qi_tab, ki_tab, q, k, v)

    # ---- Kernel 3: c_proj + residual + ln_2 + MLP + residual -> (B, T, C) f32 ----
    out = pl.pallas_call(
        proj_mlp_kernel,
        out_shape=jax.ShapeDtypeStruct((B, T, C), x.dtype),
        grid=(B, nt),
        in_specs=[
            pl.BlockSpec((1, H, t, hd), lambda b, i: (b, 0, i, 0)),      # attention out
            pl.BlockSpec((1, t, C), lambda b, i: (b, i, 0)),             # x (residual)
            const_spec((C, C)), const_spec((1, C)),                      # attn c_proj W, b
            const_spec((1, C)), const_spec((1, C)),                      # ln2 w, b
            const_spec((C, 4 * C)), const_spec((1, 4 * C)),              # mlp c_fc W, b
            const_spec((4 * C, C)), const_spec((1, C)),                  # mlp c_proj W, b
        ],
        out_specs=pl.BlockSpec((1, t, C), lambda b, i: (b, i, 0)),
        compiler_params=pltpu.CompilerParams(
            dimension_semantics=("parallel", "parallel"),
            vmem_limit_bytes=vmem_limit),
    )(y_attn, x,
      wo, params["b_o"],
      params["ln2_w"], params["ln2_b"],
      wfc, params["b_fc"],
      wpr, params["b_pr"])

    return out


def transformer_block(x, params, *, n_head, block_seq=256):
    """x: (B, T, C) float32. params: dict of f32 weights. Returns (B, T, C) float32."""
    try:
        return _transformer_block_impl(x, params, n_head=n_head, block_seq=block_seq,
                                       single_buffer_weights=True)
    except Exception:
        # Fallback for Pallas builds without pipeline_mode=pl.Buffered(1) support:
        # identical math with default double-buffered weight blocks.
        return _transformer_block_impl(x, params, n_head=n_head, block_seq=block_seq,
                                       single_buffer_weights=False)


# --------------------------------------------------------------------------------------
# Pure-JAX f32 reference with identical math (for verification)
# --------------------------------------------------------------------------------------
def reference_block(x, params, *, n_head):
    B, T, C = x.shape
    H = n_head
    hd = C // H

    def ln(h, w, b):
        mu = jnp.mean(h, axis=-1, keepdims=True)
        var = jnp.mean((h - mu) ** 2, axis=-1, keepdims=True)
        return (h - mu) / jnp.sqrt(var + 1e-5) * w[0] + b[0]

    h = ln(x, params["ln1_w"], params["ln1_b"])
    qkv = h @ params["w_qkv"] + params["b_qkv"][0]
    q, k, v = jnp.split(qkv, 3, axis=-1)
    q = q.reshape(B, T, H, hd).transpose(0, 2, 1, 3)
    k = k.reshape(B, T, H, hd).transpose(0, 2, 1, 3)
    v = v.reshape(B, T, H, hd).transpose(0, 2, 1, 3)
    att = jnp.einsum('bhtd,bhsd->bhts', q, k) / math.sqrt(hd)
    causal = jnp.tril(jnp.ones((T, T), dtype=bool))
    att = jnp.where(causal[None, None], att, -1e30)
    att = jax.nn.softmax(att, axis=-1)
    y = jnp.einsum('bhts,bhsd->bhtd', att, v)
    y = y.transpose(0, 2, 1, 3).reshape(B, T, C)
    y = y @ params["w_o"] + params["b_o"][0]
    x = x + y

    h2 = ln(x, params["ln2_w"], params["ln2_b"])
    f = h2 @ params["w_fc"] + params["b_fc"][0]
    g = 0.5 * f * (1.0 + lax.erf(f / math.sqrt(2.0)))
    m = g @ params["w_pr"] + params["b_pr"][0]
    return x + m


def _make_params(key, C):
    ks = jax.random.split(key, 8)
    init = lambda k, shape, scale=0.02: (scale * jax.random.normal(k, shape)).astype(jnp.float32)
    return {
        "ln1_w": jnp.ones((1, C), jnp.float32),
        "ln1_b": jnp.zeros((1, C), jnp.float32),
        "w_qkv": init(ks[0], (C, 3 * C)),
        "b_qkv": init(ks[1], (1, 3 * C)),
        "w_o":   init(ks[2], (C, C)),
        "b_o":   init(ks[3], (1, C)),
        "ln2_w": jnp.ones((1, C), jnp.float32),
        "ln2_b": jnp.zeros((1, C), jnp.float32),
        "w_fc":  init(ks[4], (C, 4 * C)),
        "b_fc":  init(ks[5], (1, 4 * C)),
        "w_pr":  init(ks[6], (4 * C, C)),
        "b_pr":  init(ks[7], (1, C)),
    }


if __name__ == "__main__":
    key = jax.random.PRNGKey(0)

    # Case 1: small config consistent with the module (n_embd=32, n_head=4, T=8);
    #         single sequence tile (degenerate triangular grid).
    # Case 2: T=16 with an 8-wide sequence tile -> nt=2, 3 triangular flash steps,
    #         exercising the off-diagonal (unmasked) accumulation path.
    cases = [
        dict(B=2, T=8, C=32, H=4, block_seq=256),
        dict(B=2, T=16, C=32, H=4, block_seq=8),
    ]

    for idx, cfg in enumerate(cases):
        B, T, C, H = cfg["B"], cfg["T"], cfg["C"], cfg["H"]
        params = _make_params(key, C)
        x = jax.random.normal(jax.random.PRNGKey(idx + 1), (B, T, C), dtype=jnp.float32)
        # attention_mask is unused on the flash path of the PyTorch module (eval, dropout=0),
        # so it is not an input to the kernels.

        out = transformer_block(x, params, n_head=H, block_seq=cfg["block_seq"])
        out = jax.block_until_ready(out)

        ref = reference_block(x, params, n_head=H)
        assert out.shape == (B, T, C)
        # bf16 matmul operands (f32 accumulation) -> compare against the f32 reference
        # with a correspondingly relaxed tolerance.
        assert jnp.allclose(out, ref, rtol=2e-2, atol=2e-2), f"mismatch vs reference (case {idx})"

    print("KERNEL_OK")
</pallas_src>

<mosaic_0001>
module attributes {stable_mosaic.version = 11 : i64} {
  func.func @ln1_qkv_kernel(%arg0: i32, %arg1: i32, %arg2: memref<1x8x32xf32, #tpu.memory_space<vmem>>, %arg3: memref<1x32xf32, #tpu.memory_space<vmem>>, %arg4: memref<1x32xf32, #tpu.memory_space<vmem>>, %arg5: memref<32x96xbf16, #tpu.memory_space<vmem>>, %arg6: memref<1x96xf32, #tpu.memory_space<vmem>>, %arg7: memref<1x4x8x8xbf16, #tpu.memory_space<vmem>>, %arg8: memref<1x4x8x8xbf16, #tpu.memory_space<vmem>>, %arg9: memref<1x4x8x8xbf16, #tpu.memory_space<vmem>>) attributes {dimension_semantics = [#tpu.dimension_semantics<parallel>, #tpu.dimension_semantics<parallel>], iteration_bounds = array<i64: 2, 1>, scalar_prefetch = 0 : i64, scratch_operands = 0 : i64, tpu.core_type = #tpu.core_type<tc>, window_params = [{transform_indices = @transform_0, window_bounds = array<i64: 1, 8, 32>}, {pipeline_mode = #tpu.pipeline_mode<synchronous>, transform_indices = @transform_1, window_bounds = array<i64: 1, 32>}, {pipeline_mode = #tpu.pipeline_mode<synchronous>, transform_indices = @transform_2, window_bounds = array<i64: 1, 32>}, {pipeline_mode = #tpu.pipeline_mode<synchronous>, transform_indices = @transform_3, window_bounds = array<i64: 32, 96>}, {pipeline_mode = #tpu.pipeline_mode<synchronous>, transform_indices = @transform_4, window_bounds = array<i64: 1, 96>}, {transform_indices = @transform_5, window_bounds = array<i64: 1, 4, 8, 8>}, {transform_indices = @transform_6, window_bounds = array<i64: 1, 4, 8, 8>}, {transform_indices = @transform_7, window_bounds = array<i64: 1, 4, 8, 8>}]} {
    %c0 = arith.constant 0 : index
    %c0_0 = arith.constant 0 : index
    %c0_1 = arith.constant 0 : index
    %0 = vector.load %arg2[%c0, %c0_0, %c0_1] : memref<1x8x32xf32, #tpu.memory_space<vmem>>, vector<1x8x32xf32>
    %1 = vector.shape_cast %0 : vector<1x8x32xf32> to vector<8x32xf32>
    %c0_2 = arith.constant 0 : index
    %c0_3 = arith.constant 0 : index
    %2 = vector.load %arg3[%c0_2, %c0_3] : memref<1x32xf32, #tpu.memory_space<vmem>>, vector<1x32xf32>
    %3 = vector.shape_cast %2 : vector<1x32xf32> to vector<32xf32>
    %c0_4 = arith.constant 0 : index
    %c0_5 = arith.constant 0 : index
    %4 = vector.load %arg4[%c0_4, %c0_5] : memref<1x32xf32, #tpu.memory_space<vmem>>, vector<1x32xf32>
    %5 = vector.shape_cast %4 : vector<1x32xf32> to vector<32xf32>
    %cst = arith.constant dense<0.000000e+00> : vector<8xf32>
    %6 = vector.multi_reduction <add>, %1, %cst [1] : vector<8x32xf32> to vector<8xf32>
    %7 = vector.shape_cast %6 : vector<8xf32> to vector<8x1xf32>
    %cst_6 = arith.constant 3.200000e+01 : f32
    %8 = vector.broadcast %cst_6 : f32 to vector<8x1xf32>
    %9 = arith.divf %7, %8 : vector<8x1xf32>
    %10 = vector.broadcast %9 : vector<8x1xf32> to vector<8x32xf32>
    %11 = arith.subf %1, %10 : vector<8x32xf32>
    %12 = arith.mulf %11, %11 : vector<8x32xf32>
    %cst_7 = arith.constant dense<0.000000e+00> : vector<8xf32>
    %13 = vector.multi_reduction <add>, %12, %cst_7 [1] : vector<8x32xf32> to vector<8xf32>
    %14 = vector.shape_cast %13 : vector<8xf32> to vector<8x1xf32>
    %cst_8 = arith.constant 3.200000e+01 : f32
    %15 = vector.broadcast %cst_8 : f32 to vector<8x1xf32>
    %16 = arith.divf %14, %15 : vector<8x1xf32>
    %cst_9 = arith.constant 9.99999974E-6 : f32
    %17 = vector.broadcast %cst_9 : f32 to vector<8x1xf32>
    %18 = arith.addf %16, %17 : vector<8x1xf32>
    %19 = math.rsqrt %18 : vector<8x1xf32>
    %20 = vector.broadcast %19 : vector<8x1xf32> to vector<8x32xf32>
    %21 = arith.mulf %11, %20 : vector<8x32xf32>
    %22 = vector.shape_cast %3 : vector<32xf32> to vector<1x32xf32>
    %23 = vector.broadcast %22 : vector<1x32xf32> to vector<8x32xf32>
    %24 = arith.mulf %21, %23 : vector<8x32xf32>
    %25 = vector.shape_cast %5 : vector<32xf32> to vector<1x32xf32>
    %26 = vector.broadcast %25 : vector<1x32xf32> to vector<8x32xf32>
    %27 = arith.addf %24, %26 : vector<8x32xf32>
    %28 = arith.truncf %27 : vector<8x32xf32> to vector<8x32xbf16>
    %c0_10 = arith.constant 0 : index
    %c0_11 = arith.constant 0 : index
    %29 = vector.load %arg5[%c0_10, %c0_11] : memref<32x96xbf16, #tpu.memory_space<vmem>>, vector<32x96xbf16>
    %cst_12 = arith.constant dense<0.000000e+00> : vector<8x96xf32>
    %30 = tpu.matmul %28, %29, %cst_12 {dimension_numbers = #tpu.dot_dimension_numbers<[1], [0], [0], [1], [0, 0, 1, 1], [], []>} : vector<8x32xbf16>, vector<32x96xbf16>, vector<8x96xf32> -> vector<8x96xf32>
    %c0_13 = arith.constant 0 : index
    %c0_14 = arith.constant 0 : index
    %31 = vector.load %arg6[%c0_13, %c0_14] : memref<1x96xf32, #tpu.memory_space<vmem>>, vector<1x96xf32>
    %32 = vector.shape_cast %31 : vector<1x96xf32> to vector<96xf32>
    %33 = vector.shape_cast %32 : vector<96xf32> to vector<1x96xf32>
    %34 = vector.broadcast %33 : vector<1x96xf32> to vector<8x96xf32>
    %35 = arith.addf %30, %34 : vector<8x96xf32>
    %36 = vector.extract_strided_slice %35 {offsets = [0, 0], sizes = [8, 32], strides = [1, 1]} : vector<8x96xf32> to vector<8x32xf32>
    %cst_15 = arith.constant 0.353553385 : f32
    %37 = vector.broadcast %cst_15 : f32 to vector<8x32xf32>
    %38 = arith.mulf %36, %37 : vector<8x32xf32>
    %39 = arith.truncf %38 : vector<8x32xf32> to vector<8x32xbf16>
    %40 = vector.shape_cast %39 : vector<8x32xbf16> to vector<8x4x8xbf16>
    %41 = tpu.transpose %40, [1, 0, 2] : vector<8x4x8xbf16> -> vector<4x8x8xbf16>
    %c0_16 = arith.constant 0 : index
    %c0_17 = arith.constant 0 : index
    %c0_18 = arith.constant 0 : index
    %c0_19 = arith.constant 0 : index
    %42 = vector.load %arg7[%c0_16, %c0_17, %c0_18, %c0_19] : memref<1x4x8x8xbf16, #tpu.memory_space<vmem>>, vector<1x4x8x8xbf16>
    %43 = vector.shape_cast %42 : vector<1x4x8x8xbf16> to vector<4x8x8xbf16>
    %44 = vector.shape_cast %41 : vector<4x8x8xbf16> to vector<1x4x8x8xbf16>
    tpu.vector_store %arg7[%c0_16, %c0_17, %c0_18, %c0_19], %44 {strides = array<i32>} : memref<1x4x8x8xbf16, #tpu.memory_space<vmem>>, vector<1x4x8x8xbf16>,
    %45 = vector.extract_strided_slice %35 {offsets = [0, 32], sizes = [8, 32], strides = [1, 1]} : vector<8x96xf32> to vector<8x32xf32>
    %46 = arith.truncf %45 : vector<8x32xf32> to vector<8x32xbf16>
    %47 = vector.shape_cast %46 : vector<8x32xbf16> to vector<8x4x8xbf16>
    %48 = tpu.transpose %47, [1, 0, 2] : vector<8x4x8xbf16> -> vector<4x8x8xbf16>
    %c0_20 = arith.constant 0 : index
    %c0_21 = arith.constant 0 : index
    %c0_22 = arith.constant 0 : index
    %c0_23 = arith.constant 0 : index
    %49 = vector.load %arg8[%c0_20, %c0_21, %c0_22, %c0_23] : memref<1x4x8x8xbf16, #tpu.memory_space<vmem>>, vector<1x4x8x8xbf16>
    %50 = vector.shape_cast %49 : vector<1x4x8x8xbf16> to vector<4x8x8xbf16>
    %51 = vector.shape_cast %48 : vector<4x8x8xbf16> to vector<1x4x8x8xbf16>
    tpu.vector_store %arg8[%c0_20, %c0_21, %c0_22, %c0_23], %51 {strides = array<i32>} : memref<1x4x8x8xbf16, #tpu.memory_space<vmem>>, vector<1x4x8x8xbf16>,
    %52 = vector.extract_strided_slice %35 {offsets = [0, 64], sizes = [8, 32], strides = [1, 1]} : vector<8x96xf32> to vector<8x32xf32>
    %53 = arith.truncf %52 : vector<8x32xf32> to vector<8x32xbf16>
    %54 = vector.shape_cast %53 : vector<8x32xbf16> to vector<8x4x8xbf16>
    %55 = tpu.transpose %54, [1, 0, 2] : vector<8x4x8xbf16> -> vector<4x8x8xbf16>
    %c0_24 = arith.constant 0 : index
    %c0_25 = arith.constant 0 : index
    %c0_26 = arith.constant 0 : index
    %c0_27 = arith.constant 0 : index
    %56 = vector.load %arg9[%c0_24, %c0_25, %c0_26, %c0_27] : memref<1x4x8x8xbf16, #tpu.memory_space<vmem>>, vector<1x4x8x8xbf16>
    %57 = vector.shape_cast %56 : vector<1x4x8x8xbf16> to vector<4x8x8xbf16>
    %58 = vector.shape_cast %55 : vector<4x8x8xbf16> to vector<1x4x8x8xbf16>
    tpu.vector_store %arg9[%c0_24, %c0_25, %c0_26, %c0_27], %58 {strides = array<i32>} : memref<1x4x8x8xbf16, #tpu.memory_space<vmem>>, vector<1x4x8x8xbf16>,
    return
  }
  func.func @transform_0(%arg0: i32, %arg1: i32) -> (i32, i32, i32) {
    %c0_i32 = arith.constant 0 : i32
    %c0_i32_0 = arith.constant 0 : i32
    return %arg0, %arg1, %c0_i32 : i32, i32, i32
  }
  func.func @transform_1(%arg0: i32, %arg1: i32) -> (i32, i32) {
    %c0_i32 = arith.constant 0 : i32
    %c0_i32_0 = arith.constant 0 : i32
    %c0_i32_1 = arith.constant 0 : i32
    return %c0_i32, %c0_i32_0 : i32, i32
  }
  func.func @transform_2(%arg0: i32, %arg1: i32) -> (i32, i32) {
    %c0_i32 = arith.constant 0 : i32
    %c0_i32_0 = arith.constant 0 : i32
    %c0_i32_1 = arith.constant 0 : i32
    return %c0_i32, %c0_i32_0 : i32, i32
  }
  func.func @transform_3(%arg0: i32, %arg1: i32) -> (i32, i32) {
    %c0_i32 = arith.constant 0 : i32
    %c0_i32_0 = arith.constant 0 : i32
    %c0_i32_1 = arith.constant 0 : i32
    return %c0_i32, %c0_i32_0 : i32, i32
  }
  func.func @transform_4(%arg0: i32, %arg1: i32) -> (i32, i32) {
    %c0_i32 = arith.constant 0 : i32
    %c0_i32_0 = arith.constant 0 : i32
    %c0_i32_1 = arith.constant 0 : i32
    return %c0_i32, %c0_i32_0 : i32, i32
  }
  func.func @transform_5(%arg0: i32, %arg1: i32) -> (i32, i32, i32, i32) {
    %c0_i32 = arith.constant 0 : i32
    %c0_i32_0 = arith.constant 0 : i32
    %c0_i32_1 = arith.constant 0 : i32
    return %arg0, %c0_i32, %arg1, %c0_i32_0 : i32, i32, i32, i32
  }
  func.func @transform_6(%arg0: i32, %arg1: i32) -> (i32, i32, i32, i32) {
    %c0_i32 = arith.constant 0 : i32
    %c0_i32_0 = arith.constant 0 : i32
    %c0_i32_1 = arith.constant 0 : i32
    return %arg0, %c0_i32, %arg1, %c0_i32_0 : i32, i32, i32, i32
  }
  func.func @transform_7(%arg0: i32, %arg1: i32) -> (i32, i32, i32, i32) {
    %c0_i32 = arith.constant 0 : i32
    %c0_i32_0 = arith.constant 0 : i32
    %c0_i32_1 = arith.constant 0 : i32
    return %arg0, %c0_i32, %arg1, %c0_i32_0 : i32, i32, i32, i32
  }
}

module attributes {stable_mosaic.version = 11 : i64} {
  func.func @ln1_qkv_kernel(%arg0: i32, %arg1: i32, %arg2: memref<1x8x32xf32, #tpu.memory_space<vmem>>, %arg3: memref<1x32xf32, #tpu.memory_space<vmem>>, %arg4: memref<1x32xf32, #tpu.memory_space<vmem>>, %arg5: memref<32x96xbf16, #tpu.memory_space<vmem>>, %arg6: memref<1x96xf32, #tpu.memory_space<vmem>>, %arg7: memref<1x4x8x8xbf16, #tpu.memory_space<vmem>>, %arg8: memref<1x4x8x8xbf16, #tpu.memory_space<vmem>>, %arg9: memref<1x4x8x8xbf16, #tpu.memory_space<vmem>>) attributes {dimension_semantics = [#tpu.dimension_semantics<parallel>, #tpu.dimension_semantics<parallel>], iteration_bounds = array<i64: 2, 1>, scalar_prefetch = 0 : i64, scratch_operands = 0 : i64, tpu.core_type = #tpu.core_type<tc>, window_params = [{transform_indices = @transform_0, window_bounds = array<i64: 1, 8, 32>}, {pipeline_mode = #tpu.pipeline_mode<synchronous>, transform_indices = @transform_1, window_bounds = array<i64: 1, 32>}, {pipeline_mode = #tpu.pipeline_mode<synchronous>, transform_indices = @transform_2, window_bounds = array<i64: 1, 32>}, {pipeline_mode = #tpu.pipeline_mode<synchronous>, transform_indices = @transform_3, window_bounds = array<i64: 32, 96>}, {pipeline_mode = #tpu.pipeline_mode<synchronous>, transform_indices = @transform_4, window_bounds = array<i64: 1, 96>}, {transform_indices = @transform_5, window_bounds = array<i64: 1, 4, 8, 8>}, {transform_indices = @transform_6, window_bounds = array<i64: 1, 4, 8, 8>}, {transform_indices = @transform_7, window_bounds = array<i64: 1, 4, 8, 8>}]} {
    %c0 = arith.constant 0 : index
    %c0_0 = arith.constant 0 : index
    %c0_1 = arith.constant 0 : index
    %0 = vector.load %arg2[%c0, %c0_0, %c0_1] : memref<1x8x32xf32, #tpu.memory_space<vmem>>, vector<1x8x32xf32>
    %1 = vector.shape_cast %0 : vector<1x8x32xf32> to vector<8x32xf32>
    %c0_2 = arith.constant 0 : index
    %c0_3 = arith.constant 0 : index
    %2 = vector.load %arg3[%c0_2, %c0_3] : memref<1x32xf32, #tpu.memory_space<vmem>>, vector<1x32xf32>
    %3 = vector.shape_cast %2 : vector<1x32xf32> to vector<32xf32>
    %c0_4 = arith.constant 0 : index
    %c0_5 = arith.constant 0 : index
    %4 = vector.load %arg4[%c0_4, %c0_5] : memref<1x32xf32, #tpu.memory_space<vmem>>, vector<1x32xf32>
    %5 = vector.shape_cast %4 : vector<1x32xf32> to vector<32xf32>
    %cst = arith.constant dense<0.000000e+00> : vector<8xf32>
    %6 = vector.multi_reduction <add>, %1, %cst [1] : vector<8x32xf32> to vector<8xf32>
    %7 = vector.shape_cast %6 : vector<8xf32> to vector<8x1xf32>
    %cst_6 = arith.constant 3.200000e+01 : f32
    %8 = vector.broadcast %cst_6 : f32 to vector<8x1xf32>
    %9 = arith.divf %7, %8 : vector<8x1xf32>
    %10 = vector.broadcast %9 : vector<8x1xf32> to vector<8x32xf32>
    %11 = arith.subf %1, %10 : vector<8x32xf32>
    %12 = arith.mulf %11, %11 : vector<8x32xf32>
    %cst_7 = arith.constant dense<0.000000e+00> : vector<8xf32>
    %13 = vector.multi_reduction <add>, %12, %cst_7 [1] : vector<8x32xf32> to vector<8xf32>
    %14 = vector.shape_cast %13 : vector<8xf32> to vector<8x1xf32>
    %cst_8 = arith.constant 3.200000e+01 : f32
    %15 = vector.broadcast %cst_8 : f32 to vector<8x1xf32>
    %16 = arith.divf %14, %15 : vector<8x1xf32>
    %cst_9 = arith.constant 9.99999974E-6 : f32
    %17 = vector.broadcast %cst_9 : f32 to vector<8x1xf32>
    %18 = arith.addf %16, %17 : vector<8x1xf32>
    %19 = math.rsqrt %18 : vector<8x1xf32>
    %20 = vector.broadcast %19 : vector<8x1xf32> to vector<8x32xf32>
    %21 = arith.mulf %11, %20 : vector<8x32xf32>
    %22 = vector.shape_cast %3 : vector<32xf32> to vector<1x32xf32>
    %23 = vector.broadcast %22 : vector<1x32xf32> to vector<8x32xf32>
    %24 = arith.mulf %21, %23 : vector<8x32xf32>
    %25 = vector.shape_cast %5 : vector<32xf32> to vector<1x32xf32>
    %26 = vector.broadcast %25 : vector<1x32xf32> to vector<8x32xf32>
    %27 = arith.addf %24, %26 : vector<8x32xf32>
    %28 = arith.truncf %27 : vector<8x32xf32> to vector<8x32xbf16>
    %c0_10 = arith.constant 0 : index
    %c0_11 = arith.constant 0 : index
    %29 = vector.load %arg5[%c0_10, %c0_11] : memref<32x96xbf16, #tpu.memory_space<vmem>>, vector<32x96xbf16>
    %cst_12 = arith.constant dense<0.000000e+00> : vector<8x96xf32>
    %30 = tpu.matmul %28, %29, %cst_12 {dimension_numbers = #tpu.dot_dimension_numbers<[1], [0], [0], [1], [0, 0, 1, 1], [], []>} : vector<8x32xbf16>, vector<32x96xbf16>, vector<8x96xf32> -> vector<8x96xf32>
    %c0_13 = arith.constant 0 : index
    %c0_14 = arith.constant 0 : index
    %31 = vector.load %arg6[%c0_13, %c0_14] : memref<1x96xf32, #tpu.memory_space<vmem>>, vector<1x96xf32>
    %32 = vector.shape_cast %31 : vector<1x96xf32> to vector<96xf32>
    %33 = vector.shape_cast %32 : vector<96xf32> to vector<1x96xf32>
    %34 = vector.broadcast %33 : vector<1x96xf32> to vector<8x96xf32>
    %35 = arith.addf %30, %34 : vector<8x96xf32>
    %36 = vector.extract_strided_slice %35 {offsets = [0, 0], sizes = [8, 32], strides = [1, 1]} : vector<8x96xf32> to vector<8x32xf32>
    %cst_15 = arith.constant 0.353553385 : f32
    %37 = vector.broadcast %cst_15 : f32 to vector<8x32xf32>
    %38 = arith.mulf %36, %37 : vector<8x32xf32>
    %39 = arith.truncf %38 : vector<8x32xf32> to vector<8x32xbf16>
    %40 = vector.shape_cast %39 : vector<8x32xbf16> to vector<8x4x8xbf16>
    %41 = tpu.transpose %40, [1, 0, 2] : vector<8x4x8xbf16> -> vector<4x8x8xbf16>
    %c0_16 = arith.constant 0 : index
    %c0_17 = arith.constant 0 : index
    %c0_18 = arith.constant 0 : index
    %c0_19 = arith.constant 0 : index
    %42 = vector.load %arg7[%c0_16, %c0_17, %c0_18, %c0_19] : memref<1x4x8x8xbf16, #tpu.memory_space<vmem>>, vector<1x4x8x8xbf16>
    %43 = vector.shape_cast %42 : vector<1x4x8x8xbf16> to vector<4x8x8xbf16>
    %44 = vector.shape_cast %41 : vector<4x8x8xbf16> to vector<1x4x8x8xbf16>
    tpu.vector_store %arg7[%c0_16, %c0_17, %c0_18, %c0_19], %44 {strides = array<i32>} : memref<1x4x8x8xbf16, #tpu.memory_space<vmem>>, vector<1x4x8x8xbf16>,
    %45 = vector.extract_strided_slice %35 {offsets = [0, 32], sizes = [8, 32], strides = [1, 1]} : vector<8x96xf32> to vector<8x32xf32>
    %46 = arith.truncf %45 : vector<8x32xf32> to vector<8x32xbf16>
    %47 = vector.shape_cast %46 : vector<8x32xbf16> to vector<8x4x8xbf16>
    %48 = tpu.transpose %47, [1, 0, 2] : vector<8x4x8xbf16> -> vector<4x8x8xbf16>
    %c0_20 = arith.constant 0 : index
    %c0_21 = arith.constant 0 : index
    %c0_22 = arith.constant 0 : index
    %c0_23 = arith.constant 0 : index
    %49 = vector.load %arg8[%c0_20, %c0_21, %c0_22, %c0_23] : memref<1x4x8x8xbf16, #tpu.memory_space<vmem>>, vector<1x4x8x8xbf16>
    %50 = vector.shape_cast %49 : vector<1x4x8x8xbf16> to vector<4x8x8xbf16>
    %51 = vector.shape_cast %48 : vector<4x8x8xbf16> to vector<1x4x8x8xbf16>
    tpu.vector_store %arg8[%c0_20, %c0_21, %c0_22, %c0_23], %51 {strides = array<i32>} : memref<1x4x8x8xbf16, #tpu.memory_space<vmem>>, vector<1x4x8x8xbf16>,
    %52 = vector.extract_strided_slice %35 {offsets = [0, 64], sizes = [8, 32], strides = [1, 1]} : vector<8x96xf32> to vector<8x32xf32>
    %53 = arith.truncf %52 : vector<8x32xf32> to vector<8x32xbf16>
    %54 = vector.shape_cast %53 : vector<8x32xbf16> to vector<8x4x8xbf16>
    %55 = tpu.transpose %54, [1, 0, 2] : vector<8x4x8xbf16> -> vector<4x8x8xbf16>
    %c0_24 = arith.constant 0 : index
    %c0_25 = arith.constant 0 : index
    %c0_26 = arith.constant 0 : index
    %c0_27 = arith.constant 0 : index
    %56 = vector.load %arg9[%c0_24, %c0_25, %c0_26, %c0_27] : memref<1x4x8x8xbf16, #tpu.memory_space<vmem>>, vector<1x4x8x8xbf16>
    %57 = vector.shape_cast %56 : vector<1x4x8x8xbf16> to vector<4x8x8xbf16>
    %58 = vector.shape_cast %55 : vector<4x8x8xbf16> to vector<1x4x8x8xbf16>
    tpu.vector_store %arg9[%c0_24, %c0_25, %c0_26, %c0_27], %58 {strides = array<i32>} : memref<1x4x8x8xbf16, #tpu.memory_space<vmem>>, vector<1x4x8x8xbf16>,
    return
  }
  func.func @transform_0(%arg0: i32, %arg1: i32) -> (i32, i32, i32) {
    %c0_i32 = arith.constant 0 : i32
    %c0_i32_0 = arith.constant 0 : i32
    return %arg0, %arg1, %c0_i32 : i32, i32, i32
  }
  func.func @transform_1(%arg0: i32, %arg1: i32) -> (i32, i32) {
    %c0_i32 = arith.constant 0 : i32
    %c0_i32_0 = arith.constant 0 : i32
    %c0_i32_1 = arith.constant 0 : i32
    return %c0_i32, %c0_i32_0 : i32, i32
  }
  func.func @transform_2(%arg0: i32, %arg1: i32) -> (i32, i32) {
    %c0_i32 = arith.constant 0 : i32
    %c0_i32_0 = arith.constant 0 : i32
    %c0_i32_1 = arith.constant 0 : i32
    return %c0_i32, %c0_i32_0 : i32, i32
  }
  func.func @transform_3(%arg0: i32, %arg1: i32) -> (i32, i32) {
    %c0_i32 = arith.constant 0 : i32
    %c0_i32_0 = arith.constant 0 : i32
    %c0_i32_1 = arith.constant 0 : i32
    return %c0_i32, %c0_i32_0 : i32, i32
  }
  func.func @transform_4(%arg0: i32, %arg1: i32) -> (i32, i32) {
    %c0_i32 = arith.constant 0 : i32
    %c0_i32_0 = arith.constant 0 : i32
    %c0_i32_1 = arith.constant 0 : i32
    return %c0_i32, %c0_i32_0 : i32, i32
  }
  func.func @transform_5(%arg0: i32, %arg1: i32) -> (i32, i32, i32, i32) {
    %c0_i32 = arith.constant 0 : i32
    %c0_i32_0 = arith.constant 0 : i32
    %c0_i32_1 = arith.constant 0 : i32
    return %arg0, %c0_i32, %arg1, %c0_i32_0 : i32, i32, i32, i32
  }
  func.func @transform_6(%arg0: i32, %arg1: i32) -> (i32, i32, i32, i32) {
    %c0_i32 = arith.constant 0 : i32
    %c0_i32_0 = arith.constant 0 : i32
    %c0_i32_1 = arith.constant 0 : i32
    return %arg0, %c0_i32, %arg1, %c0_i32_0 : i32, i32, i32, i32
  }
  func.func @transform_7(%arg0: i32, %arg1: i32) -> (i32, i32, i32, i32) {
    %c0_i32 = arith.constant 0 : i32
    %c0_i32_0 = arith.constant 0 : i32
    %c0_i32_1 = arith.constant 0 : i32
    return %arg0, %c0_i32, %arg1, %c0_i32_0 : i32, i32, i32, i32
  }
}

</mosaic_0001>

<llo_original>
// kernel: tpu_custom_call.1
$region0: #{tpu_custom_call.1}
  #allocation0 [shape = 'u32[]', space=smem, size = 0x4, offset = 0x4, fixed_abs, tag = 'smem constant byte address 0x4 - core index']
  #allocation1 [shape = 'u32[144,128]{1,0:T(1,128)}', space=vmem, size = 0x12000, scoped, tag = 'internal scratch']
  %s0 = inlined_call_operand.hbm [shape: f32[2,8,32], index: 0, kind: input, shape index: {}]
  %s1 = inlined_call_operand.hbm [shape: f32[1,32], index: 1, kind: input, shape index: {}]
  %s2 = inlined_call_operand.hbm [shape: f32[1,32], index: 2, kind: input, shape index: {}]
  %s3 = inlined_call_operand.hbm [shape: bf16[32,96], index: 3, kind: input, shape index: {}]
  %s4 = inlined_call_operand.hbm [shape: f32[1,96], index: 4, kind: input, shape index: {}]
  %s5 = inlined_call_operand.hbm [shape: bf16[2,4,8,8], index: 5, kind: output, shape index: {0}]
  %s6 = inlined_call_operand.hbm [shape: bf16[2,4,8,8], index: 6, kind: output, shape index: {1}]
  %s7 = inlined_call_operand.hbm [shape: bf16[2,4,8,8], index: 7, kind: output, shape index: {2}]
  %8 = xla_tuple %s5, %s6, %s7
  %s9 = sld [smem:[#allocation0]]
  $region89: #{tpu_custom_call.1} parent=0
    _
  %s11 = ssub.s32 1, %s9
  %s12 = scalar_select 0, %s11, %s9
  $region1: #{tpu_custom_call.1} parent=0
    #allocation2 [shape = 'u8[8192]{0}', space=vmem, size = 0x2000, scoped, tag = 'input window, operand 0']
    #allocation3 [shape = 's32[2]{0}', space=sflag, size = 0x8, scoped, tag = 'scoped memory for tpu_custom_call.1']
    #allocation4 [shape = 's32[2]{0}', space=sflag, size = 0x8, scoped, tag = 'scoped memory for tpu_custom_call.1']
    #allocation5 [shape = 'u8[512]{0}', space=vmem, size = 0x400, scoped, tag = 'input window, operand 1, single buffered']
    #allocation6 [shape = 's32[1]{0}', space=sflag, size = 0x4, scoped, tag = 'scoped memory for tpu_custom_call.1']
    #allocation7 [shape = 'u8[512]{0}', space=vmem, size = 0x400, scoped, tag = 'input window, operand 2, single buffered']
    #allocation8 [shape = 'u8[8192]{0}', space=vmem, size = 0x2000, scoped, tag = 'input window, operand 3, single buffered']
    #allocation9 [shape = 's32[1]{0}', space=sflag, size = 0x4, scoped, tag = 'scoped memory for tpu_custom_call.1']
    #allocation10 [shape = 'u8[512]{0}', space=vmem, size = 0x400, scoped, tag = 'input window, operand 4, single buffered']
    #allocation11 [shape = 'u8[16384]{0}', space=vmem, size = 0x4000, scoped, tag = 'output window, operand 0']
    #allocation12 [shape = 'u8[16384]{0}', space=vmem, size = 0x4000, scoped, tag = 'output window, operand 1']
    #allocation13 [shape = 's32[2]{0}', space=sflag, size = 0x8, scoped, tag = 'scoped memory for tpu_custom_call.1']
    #allocation14 [shape = 'u8[16384]{0}', space=vmem, size = 0x4000, scoped, tag = 'output window, operand 2']
    %13 = vsyncpa [#allocation3], 0
    %s14 = scalar_lea.sflag [#allocation3], 1
    %15 = vsyncpa %s14, 0
    %16 = vsyncpa [#allocation6], 0
    %17 = vsyncpa [#allocation9], 0
    %18 = vsyncpa [#allocation4], 0
    %s19 = scalar_lea.sflag [#allocation4], 1
    %20 = vsyncpa %s19, 0
    %21 = vsyncpa [#allocation13], 0
    %s22 = scalar_lea.sflag [#allocation13], 1
    %23 = vsyncpa %s22, 0
    loop: start=0, step=1, limit=4
    $region2: #{tpu_custom_call.1} parent=1 // loop_pre_header
      _
    $region3: #{tpu_custom_call.1} parent=1 // loop_header
      %s25 = sphi 0, %s29
      %p26 = scmp.ge.s32.totalorder %s25, 4
      %s32 = sphi 0, %s44
      %s33 = sphi 0, %s40
      %s34 = sphi 0, %s32
      %s35 = sphi 0, %s33
      %s36 = sphi 0, %s34
      %s37 = sphi 0, %s35
      %s49 = sphi 0, %s51
      %s52 = sphi 0, %s49
      %s53 = sphi 0, %s52
      %s69 = sphi 0, %s53
      %s73 = sphi 0, %s73
      %s75 = sphi 0, %s73
      %s76 = sphi 0, %s75
      %s90 = sphi 0, %s76
      %s94 = sphi 0, %s94
      %s96 = sphi 0, %s94
      %s97 = sphi 0, %s96
      %s111 = sphi 0, %s97
      %s115 = sphi 0, %s115
      %s117 = sphi 0, %s115
      %s118 = sphi 0, %s117
      %s132 = sphi 0, %s118
      %s136 = sphi 0, %s136
      %s138 = sphi 0, %s136
      %s139 = sphi 0, %s138
      %s153 = sphi 0, %s139
      %s161 = sphi 0, %s163
      %s164 = sphi 0, %s161
      %s165 = sphi 0, %s164
      %s181 = sphi 0, %s165
      %s189 = sphi 0, %s191
      %s192 = sphi 0, %s189
      %s193 = sphi 0, %s192
      %s209 = sphi 0, %s193
      %s217 = sphi 0, %s219
      %s220 = sphi 0, %s217
      %s221 = sphi 0, %s220
      %s237 = sphi 0, %s221
    $region4: #{tpu_custom_call.1} parent=1 // loop_header_branch
      %28 = sbr.rel (%p26) target = $region8
    $region5: #{tpu_custom_call.1} parent=1 // loop_body
      %s30 = ssub.s32 %s25, 1
      %s31 = ssub.s32 %s25, 2
      %s38 = sadd.s32 1, %s33
      %p39 = scmp.ge.s32.totalorder %s38, 1
      %s40 = scalar_select %p39, 0, %s38
      %s41 = sadd.s32 1, %s32
      %s42 = scalar_select %p39, %s41, %s32
      %p43 = scmp.ge.s32.totalorder %s42, 2
      %s44 = scalar_select %p43, 0, %s42
      %s45 = ssub.s32 %s32, %s44
      %s46 = ssub.s32 %s33, %s40
      %s47 = sor.u32 %s45, %s46
      %p48 = scmp.eq.s32.totalorder %s47, 0
      %s50 = sadd.s32 %s49, 1
      %s51 = scalar_select %p48, %s49, %s50
      %p54 = pneg %p48
      %p55 = scmp.eq.s32.totalorder %s25, 1
      %p56 = por %p54, %p55
      %p57 = scmp.ne.s32.totalorder %s49, %s52
      %p58 = scmp.eq.s32.totalorder %s25, 0
      %p59 = por %p57, %p58
      %p60 = scmp.ne.s32.totalorder %s49, %s52
      %p61 = scmp.eq.s32.totalorder %s30, 1
      %p62 = por %p60, %p61
      %p63 = scmp.ne.s32.totalorder %s52, %s53
      %p64 = scmp.eq.s32.totalorder %s30, 0
      %p65 = por %p63, %p64
      %p66 = scmp.ne.s32.totalorder %s52, %s53
      %p67 = scmp.eq.s32.totalorder %s31, 1
      %p68 = por %p66, %p67
      %p70 = scmp.ne.s32.totalorder %s53, %s69
      %p71 = scmp.eq.s32.totalorder %s31, 0
      %p72 = por %p70, %p71
      %s74 = sadd.s32 %s73, 1
      %p77 = scmp.eq.s32.totalorder %s25, 1
      %p78 = scmp.ne.s32.totalorder %s73, %s75
      %p79 = scmp.eq.s32.totalorder %s25, 0
      %p80 = por %p78, %p79
      %p81 = scmp.ne.s32.totalorder %s73, %s75
      %p82 = scmp.eq.s32.totalorder %s30, 1
      %p83 = por %p81, %p82
      %p84 = scmp.ne.s32.totalorder %s75, %s76
      %p85 = scmp.eq.s32.totalorder %s30, 0
      %p86 = por %p84, %p85
      %p87 = scmp.ne.s32.totalorder %s75, %s76
      %p88 = scmp.eq.s32.totalorder %s31, 1
      %p89 = por %p87, %p88
      %p91 = scmp.ne.s32.totalorder %s76, %s90
      %p92 = scmp.eq.s32.totalorder %s31, 0
      %p93 = por %p91, %p92
      %s95 = sadd.s32 %s94, 1
      %p98 = scmp.eq.s32.totalorder %s25, 1
      %p99 = scmp.ne.s32.totalorder %s94, %s96
      %p100 = scmp.eq.s32.totalorder %s25, 0
      %p101 = por %p99, %p100
      %p102 = scmp.ne.s32.totalorder %s94, %s96
      %p103 = scmp.eq.s32.totalorder %s30, 1
      %p104 = por %p102, %p103
      %p105 = scmp.ne.s32.totalorder %s96, %s97
      %p106 = scmp.eq.s32.totalorder %s30, 0
      %p107 = por %p105, %p106
      %p108 = scmp.ne.s32.totalorder %s96, %s97
      %p109 = scmp.eq.s32.totalorder %s31, 1
      %p110 = por %p108, %p109
      %p112 = scmp.ne.s32.totalorder %s97, %s111
      %p113 = scmp.eq.s32.totalorder %s31, 0
      %p114 = por %p112, %p113
      %s116 = sadd.s32 %s115, 1
      %p119 = scmp.eq.s32.totalorder %s25, 1
      %p120 = scmp.ne.s32.totalorder %s115, %s117
      %p121 = scmp.eq.s32.totalorder %s25, 0
      %p122 = por %p120, %p121
      %p123 = scmp.ne.s32.totalorder %s115, %s117
      %p124 = scmp.eq.s32.totalorder %s30, 1
      %p125 = por %p123, %p124
      %p126 = scmp.ne.s32.totalorder %s117, %s118
      %p127 = scmp.eq.s32.totalorder %s30, 0
      %p128 = por %p126, %p127
      %p129 = scmp.ne.s32.totalorder %s117, %s118
      %p130 = scmp.eq.s32.totalorder %s31, 1
      %p131 = por %p129, %p130
      %p133 = scmp.ne.s32.totalorder %s118, %s132
      %p134 = scmp.eq.s32.totalorder %s31, 0
      %p135 = por %p133, %p134
      %s137 = sadd.s32 %s136, 1
      %p140 = scmp.eq.s32.totalorder %s25, 1
      %p141 = scmp.ne.s32.totalorder %s136, %s138
      %p142 = scmp.eq.s32.totalorder %s25, 0
      %p143 = por %p141, %p142
      %p144 = scmp.ne.s32.totalorder %s136, %s138
      %p145 = scmp.eq.s32.totalorder %s30, 1
      %p146 = por %p144, %p145
      %p147 = scmp.ne.s32.totalorder %s138, %s139
      %p148 = scmp.eq.s32.totalorder %s30, 0
      %p149 = por %p147, %p148
      %p150 = scmp.ne.s32.totalorder %s138, %s139
      %p151 = scmp.eq.s32.totalorder %s31, 1
      %p152 = por %p150, %p151
      %p154 = scmp.ne.s32.totalorder %s139, %s153
      %p155 = scmp.eq.s32.totalorder %s31, 0
      %p156 = por %p154, %p155
      %s157 = ssub.s32 %s32, %s44
      %s158 = ssub.s32 %s33, %s40
      %s159 = sor.u32 %s157, %s158
      %p160 = scmp.eq.s32.totalorder %s159, 0
      %s162 = sadd.s32 %s161, 1
      %s163 = scalar_select %p160, %s161, %s162
      %p166 = pneg %p160
      %p167 = scmp.eq.s32.totalorder %s25, 1
      %p168 = por %p166, %p167
      %p169 = scmp.ne.s32.totalorder %s161, %s164
      %p170 = scmp.eq.s32.totalorder %s25, 0
      %p171 = por %p169, %p170
      %p172 = scmp.ne.s32.totalorder %s161, %s164
      %p173 = scmp.eq.s32.totalorder %s30, 1
      %p174 = por %p172, %p173
      %p175 = scmp.ne.s32.totalorder %s164, %s165
      %p176 = scmp.eq.s32.totalorder %s30, 0
      %p177 = por %p175, %p176
      %p178 = scmp.ne.s32.totalorder %s164, %s165
      %p179 = scmp.eq.s32.totalorder %s31, 1
      %p180 = por %p178, %p179
      %p182 = scmp.ne.s32.totalorder %s165, %s181
      %p183 = scmp.eq.s32.totalorder %s31, 0
      %p184 = por %p182, %p183
      %s185 = ssub.s32 %s32, %s44
      %s186 = ssub.s32 %s33, %s40
      %s187 = sor.u32 %s185, %s186
      %p188 = scmp.eq.s32.totalorder %s187, 0
      %s190 = sadd.s32 %s189, 1
      %s191 = scalar_select %p188, %s189, %s190
      %p194 = pneg %p188
      %p195 = scmp.eq.s32.totalorder %s25, 1
      %p196 = por %p194, %p195
      %p197 = scmp.ne.s32.totalorder %s189, %s192
      %p198 = scmp.eq.s32.totalorder %s25, 0
      %p199 = por %p197, %p198
      %p200 = scmp.ne.s32.totalorder %s189, %s192
      %p201 = scmp.eq.s32.totalorder %s30, 1
      %p202 = por %p200, %p201
      %p203 = scmp.ne.s32.totalorder %s192, %s193
      %p204 = scmp.eq.s32.totalorder %s30, 0
      %p205 = por %p203, %p204
      %p206 = scmp.ne.s32.totalorder %s192, %s193
      %p207 = scmp.eq.s32.totalorder %s31, 1
      %p208 = por %p206, %p207
      %p210 = scmp.ne.s32.totalorder %s193, %s209
      %p211 = scmp.eq.s32.totalorder %s31, 0
      %p212 = por %p210, %p211
      %s213 = ssub.s32 %s32, %s44
      %s214 = ssub.s32 %s33, %s40
      %s215 = sor.u32 %s213, %s214
      %p216 = scmp.eq.s32.totalorder %s215, 0
      %s218 = sadd.s32 %s217, 1
      %s219 = scalar_select %p216, %s217, %s218
      %p222 = pneg %p216
      %p223 = scmp.eq.s32.totalorder %s25, 1
      %p224 = por %p222, %p223
      %p225 = scmp.ne.s32.totalorder %s217, %s220
      %p226 = scmp.eq.s32.totalorder %s25, 0
      %p227 = por %p225, %p226
      %p228 = scmp.ne.s32.totalorder %s217, %s220
      %p229 = scmp.eq.s32.totalorder %s30, 1
      %p230 = por %p228, %p229
      %p231 = scmp.ne.s32.totalorder %s220, %s221
      %p232 = scmp.eq.s32.totalorder %s30, 0
      %p233 = por %p231, %p232
      %p234 = scmp.ne.s32.totalorder %s220, %s221
      %p235 = scmp.eq.s32.totalorder %s31, 1
      %p236 = por %p234, %p235
      %p238 = scmp.ne.s32.totalorder %s221, %s237
      %p239 = scmp.eq.s32.totalorder %s31, 0
      %p240 = por %p238, %p239
      %p241 = scmp.le.s32.totalorder 1, %s25
      %p242 = scmp.lt.s32.totalorder %s25, 3
      %p243 = pnand %p241, %p242
      %p244 = pneg %p243
      // Predicated region
      $region9: #{tpu_custom_call.1} parent=5 // pred_check
        _
      $region10: #{tpu_custom_call.1} parent=5 // pred_check_branch
        %246 = sbr.rel (%p243) target = $region12
      $region11: #{tpu_custom_call.1} parent=5 // pred_region
        %s247 = ssub.s32 %s25, 1
        // Predicated region
        $region13: #{tpu_custom_call.1} parent=11 // pred_check
          %p248 = pneg %p86
        $region14: #{tpu_custom_call.1} parent=11 // pred_check_branch
          %250 = sbr.rel (%p248) target = $region16
        $region15: #{tpu_custom_call.1} parent=11 // pred_region
          %s252 = ssub.s32 16, 16
          %253 = vsyncadd [#allocation6], %s252
          %s255 = sshll.u32 [#allocation5], 4
          %s256 = int_to_ptr.vmem [resolvable:$true] %s255
          %258 = dma.hbm_to_vmem [thread:$0]  %s1, 16, %s256, [#allocation6]
        $region16: #{tpu_custom_call.1} parent=11 // pred_fallthru
          _
        // Predicated region
        $region17: #{tpu_custom_call.1} parent=11 // pred_check
          %p259 = pneg %p107
        $region18: #{tpu_custom_call.1} parent=11 // pred_check_branch
          %261 = sbr.rel (%p259) target = $region20
        $region19: #{tpu_custom_call.1} parent=11 // pred_region
          %s263 = ssub.s32 16, 16
          %264 = vsyncadd [#allocation6], %s263
          %s266 = sshll.u32 [#allocation7], 4
          %s267 = int_to_ptr.vmem [resolvable:$true] %s266
          %269 = dma.hbm_to_vmem [thread:$0]  %s2, 16, %s267, [#allocation6]
        $region20: #{tpu_custom_call.1} parent=11 // pred_fallthru
          _
        // Predicated region
        $region21: #{tpu_custom_call.1} parent=11 // pred_check
          %p270 = pneg %p128
        $region22: #{tpu_custom_call.1} parent=11 // pred_check_branch
          %272 = sbr.rel (%p270) target = $region24
        $region23: #{tpu_custom_call.1} parent=11 // pred_region
          %s274 = ssub.s32 256, 256
          %275 = vsyncadd [#allocation9], %s274
          %s276 = sshll.u32 [#allocation8], 4
          %s277 = int_to_ptr.vmem [resolvable:$true] %s276
          %282 = dma.hbm_to_vmem [thread:$0]  %s3, 256, %s277, [#allocation9], 64, 64, 4
        $region24: #{tpu_custom_call.1} parent=11 // pred_fallthru
          _
        // Predicated region
        $region25: #{tpu_custom_call.1} parent=11 // pred_check
          %p283 = pneg %p149
        $region26: #{tpu_custom_call.1} parent=11 // pred_check_branch
          %285 = sbr.rel (%p283) target = $region28
        $region27: #{tpu_custom_call.1} parent=11 // pred_region
          %s287 = ssub.s32 16, 16
          %288 = vsyncadd [#allocation9], %s287
          %s290 = sshll.u32 [#allocation10], 4
          %s291 = int_to_ptr.vmem [resolvable:$true] %s290
          %293 = dma.hbm_to_vmem [thread:$0]  %s4, 16, %s291, [#allocation9]
        $region28: #{tpu_custom_call.1} parent=11 // pred_fallthru
          _
      $region12: #{tpu_custom_call.1} parent=5 // pred_fallthru
        _
      %p294 = scmp.lt.s32.totalorder %s25, 2
      // Predicated region
      $region29: #{tpu_custom_call.1} parent=5 // pred_check
        %p295 = pneg %p294
      $region30: #{tpu_custom_call.1} parent=5 // pred_check_branch
        %297 = sbr.rel (%p295) target = $region32
      $region31: #{tpu_custom_call.1} parent=5 // pred_region
        // Predicated region
        $region33: #{tpu_custom_call.1} parent=31 // pred_check
          %p298 = pneg %p59
        $region34: #{tpu_custom_call.1} parent=31 // pred_check_branch
          %300 = sbr.rel (%p298) target = $region36
        $region35: #{tpu_custom_call.1} parent=31 // pred_region
          %s301 = sand.u32 %s49, 1
          %s302 = scalar_lea.sflag [#allocation3], %s301
          %s303 = sand.u32 %s49, 1
          %s304 = smul.addr %s303, 8
          %s305 = scalar_lea.vmem [#allocation2], %s304
          %s307 = ssub.s32 128, 128
          %308 = vsyncadd %s302, %s307
          %s309 = sadd.s32 %s33, %s32
          %s310 = smul.addr %s309, 128
          %s311 = scalar_lea.hbm %s0, %s310
          %s313 = sshll.u32 %s305, 4
          %s314 = int_to_ptr.vmem [resolvable:$true] %s313
          %316 = dma.hbm_to_vmem [thread:$0]  %s311, 128, %s314, %s302
        $region36: #{tpu_custom_call.1} parent=31 // pred_fallthru
          _
      $region32: #{tpu_custom_call.1} parent=5 // pred_fallthru
        _
      %p317 = scmp.le.s32.totalorder 1, %s25
      %p318 = scmp.lt.s32.totalorder %s25, 3
      %p319 = pnand %p317, %p318
      %p320 = pneg %p319
      // Predicated region
      $region37: #{tpu_custom_call.1} parent=5 // pred_check
        _
      $region38: #{tpu_custom_call.1} parent=5 // pred_check_branch
        %322 = sbr.rel (%p319) target = $region40
      $region39: #{tpu_custom_call.1} parent=5 // pred_region
        %s323 = ssub.s32 %s25, 1
        %s324 = sand.u32 %s52, 1
        %s325 = scalar_lea.sflag [#allocation3], %s324
        %s326 = sand.u32 %s52, 1
        %s327 = smul.addr %s326, 8
        %s328 = scalar_lea.vmem [#allocation2], %s327
        // Predicated region
        $region41: #{tpu_custom_call.1} parent=39 // pred_check
          %p329 = pneg %p65
        $region42: #{tpu_custom_call.1} parent=39 // pred_check_branch
          %331 = sbr.rel (%p329) target = $region44
        $region43: #{tpu_custom_call.1} parent=39 // pred_region
          %332 = dma.done %s325, 128
        $region44: #{tpu_custom_call.1} parent=39 // pred_fallthru
          _
        // Predicated region
        $region45: #{tpu_custom_call.1} parent=39 // pred_check
          %p333 = pneg %p86
        $region46: #{tpu_custom_call.1} parent=39 // pred_check_branch
          %335 = sbr.rel (%p333) target = $region48
        $region47: #{tpu_custom_call.1} parent=39 // pred_region
          %336 = dma.done [#allocation6], 16
        $region48: #{tpu_custom_call.1} parent=39 // pred_fallthru
          _
        // Predicated region
        $region49: #{tpu_custom_call.1} parent=39 // pred_check
          %p337 = pneg %p107
        $region50: #{tpu_custom_call.1} parent=39 // pred_check_branch
          %339 = sbr.rel (%p337) target = $region52
        $region51: #{tpu_custom_call.1} parent=39 // pred_region
          %340 = dma.done [#allocation6], 16
        $region52: #{tpu_custom_call.1} parent=39 // pred_fallthru
          _
        // Predicated region
        $region53: #{tpu_custom_call.1} parent=39 // pred_check
          %p341 = pneg %p128
        $region54: #{tpu_custom_call.1} parent=39 // pred_check_branch
          %343 = sbr.rel (%p341) target = $region56
        $region55: #{tpu_custom_call.1} parent=39 // pred_region
          %344 = dma.done [#allocation9], 256
        $region56: #{tpu_custom_call.1} parent=39 // pred_fallthru
          _
        // Predicated region
        $region57: #{tpu_custom_call.1} parent=39 // pred_check
          %p345 = pneg %p149
        $region58: #{tpu_custom_call.1} parent=39 // pred_check_branch
          %347 = sbr.rel (%p345) target = $region60
        $region59: #{tpu_custom_call.1} parent=39 // pred_region
          %348 = dma.done [#allocation9], 16
        $region60: #{tpu_custom_call.1} parent=39 // pred_fallthru
          _
        %s349 = sand.u32 %s52, 1
        %s350 = scalar_lea.sflag [#allocation3], %s349
        %s351 = sand.u32 %s52, 1
        %s352 = smul.addr %s351, 8
        %s353 = scalar_lea.vmem [#allocation2], %s352
        %p354 = pneg %p65
        %p355 = pneg %p62
        %p356 = pneg %p86
        %p357 = pneg %p83
        %p358 = pneg %p107
        %p359 = pneg %p104
        %p360 = pneg %p128
        %p361 = pneg %p125
        %p362 = pneg %p149
        %p363 = pneg %p146
        %p364 = pneg %p177
        %p365 = pneg %p174
        %s366 = sand.u32 %s164, 1
        %s367 = scalar_lea.sflag [#allocation4], %s366
        %s368 = sand.u32 %s164, 1
        %s369 = smul.addr %s368, 16
        %s370 = scalar_lea.vmem [#allocation11], %s369
        %p371 = pneg %p205
        %p372 = pneg %p202
        %s373 = sand.u32 %s30, 1
        %s374 = scalar_lea.sflag [#allocation13], %s373
        %s375 = sand.u32 %s192, 1
        %s376 = smul.addr %s375, 16
        %s377 = scalar_lea.vmem [#allocation12], %s376
        %p378 = pneg %p233
        %p379 = pneg %p230
        %s380 = sand.u32 %s30, 1
        %s381 = scalar_lea.sflag [#allocation13], %s380
        %s382 = sand.u32 %s220, 1
        %s383 = smul.addr %s382, 16
        %s384 = scalar_lea.vmem [#allocation14], %s383
        %v386 = vld [vmem:[%s328] sm:$0xff]
        %v387 = vld [vmem:[#allocation5] sm:$0x1]
        %v388 = vld [vmem:[#allocation7] sm:$0x1]
        %vm389 = vcmask 261120
        %v390 = vsel %vm389, %v386, 0.0
        %391 = vadd.xlane.f32.xlu0 %v390
        %v392 = vpop.xlane.xlu0 %391
        %v393 = vrcp.pop 32.0
        %v394 = vmul.f32 %v392, %v393
        %v395 = vsub.f32 %v386, %v394
        %v396 = vmul.f32 %v395, %v395
        %v397 = vsel %vm389, %v396, 0.0
        %398 = vadd.xlane.f32.xlu0 %v397
        %v399 = vpop.xlane.xlu0 %398
        %v400 = vmul.f32 %v399, %v393
        %v401 = vadd.f32 %v400, 1e-05
        %v402 = vrsqrt.pop %v401
        %v403 = vmul.f32 %v395, %v402
        %v405 = vlaneseq
        %v406 = vshrl.u32 %v405, 7
        %v407 = vsub.s32 0, %v406
        %v408 = vrot.slane %v387, %v407
        %v410 = vmul.f32 %v403, %v408
        %v412 = vlaneseq
        %v413 = vshrl.u32 %v412, 7
        %v414 = vsub.s32 0, %v413
        %v415 = vrot.slane %v388, %v414
        %v417 = vadd.f32 %v410, %v415
        %v418 = vpack.c.bf16 %v417, %v417
        %v419 = vld [vmem:[#allocation8] sm:$0xf]
        %v420 = vld [vmem:[#allocation8 + $0x4] sm:$0xf]
        %v421 = vld [vmem:[#allocation8 + $0x8] sm:$0xf]
        %v422 = vld [vmem:[#allocation8 + $0xc] sm:$0xf]
        %v423 = vld [vmem:[#allocation10] sm:$0x1]
        %v425 = vlaneseq
        %v426 = vshrl.u32 %v425, 7
        %v427 = vsub.s32 0, %v426
        %v428 = vrot.slane %v423, %v427
        %v434 = vunpack.c.l.b16 %v419
        %v435 = vunpack.c.l.b16 %v420
        %v436 = vunpack.c.l.b16 %v421
        %v437 = vunpack.c.l.b16 %v422
        %v438 = vpack.c.b16 %v435, %v434
        %v439 = vpack.c.b16 %v437, %v436
        %v443 = vsel %vm389, %v418, 0
        %445 = vmatprep.subr.bf16.mxu0 0
        %446 = vmatpush1.bf16.msra.mxu0 %v438
        %447 = vmatprep.subr.bf16.mxu0 0
        %448 = vmatpush1.bf16.msra.mxu0 %v439
        %449 = vmatprep.subr.bf16.mxu0 0
        %450 = vmatpush1.bf16.msra.mxu0 0
        %451 = vmatprep.subr.bf16.mxu0 0
        %452 = vmatpush1.bf16.msra.mxu0 0
        %453 = vmatprep.subr.bf16.mxu0 0
        %454 = vmatpush1.bf16.msra.mxu0 0
        %455 = vmatprep.subr.bf16.mxu0 0
        %456 = vmatpush1.bf16.msra.mxu0 0
        %457 = vmatprep.subr.bf16.mxu0 0
        %458 = vmatpush1.bf16.msra.mxu0 0
        %459 = vmatprep.subr.bf16.mxu0 0
        %460 = vmatpush1.bf16.msra.mxu0 0
        %461 = vmatprep.subr.bf16.mxu0 0
        %462 = vmatpush1.bf16.msra.mxu0 0
        %463 = vmatprep.subr.bf16.mxu0 0
        %464 = vmatpush1.bf16.msra.mxu0 0
        %465 = vmatprep.subr.bf16.mxu0 0
        %466 = vmatpush1.bf16.msra.mxu0 0
        %467 = vmatprep.subr.bf16.mxu0 0
        %468 = vmatpush1.bf16.msra.mxu0 0
        %469 = vmatprep.subr.bf16.mxu0 0
        %470 = vmatpush1.bf16.msra.mxu0 0
        %471 = vmatprep.subr.bf16.mxu0 0
        %472 = vmatpush1.bf16.msra.mxu0 0
        %473 = vmatprep.subr.bf16.mxu0 0
        %474 = vmatpush1.bf16.msra.mxu0 0
        %475 = vmatprep.subr.bf16.mxu0 0
        %476 = vmatpush1.bf16.msra.mxu0 0
        %477 = vmatprep.mubr.bf16.mxu0 0
        %478 = vmatmul.mubr.bf16.gmra.mrb[0].mxu0 %v443
        %v479 = vpop.f32.mrb[0].mxu0
        %v480 = vadd.f32 %v428, %v479
        %v481 = vpop.f32.mrb[0].mxu0
        %v482 = vpop.f32.mrb[0].mxu0
        %v483 = vpop.f32.mrb[0].mxu0
        %484 = vdwg.mxu0
        %v485 = vmul.f32 %v480, 0.35355338
        %v486 = vpack.c.bf16 %v485, %v485
        %488 = vrot.lane.b32.xlu0 %v486, 120
        %v489 = vpop.permute.xlu0 %488
        %490 = vrot.lane.b32.xlu0 %v486, 112
        %v491 = vpop.permute.xlu0 %490
        %492 = vrot.lane.b32.xlu0 %v486, 104
        %v493 = vpop.permute.xlu0 %492
        %v495 = vunpack.c.l.s4 1983009808
        %v496 = vunpack.c.0.s8 %v495
        %v497 = vlaneseq
        %v498 = vshrl.u32 %v497, 7
        %v499 = vsub.s32 %v496, %v498
        %v500 = vrot.slane %v486, %v499
        %v503 = vunpack.c.l.s4 1983009808
        %v504 = vunpack.c.0.s8 %v503
        %v505 = vlaneseq
        %v506 = vshrl.u32 %v505, 7
        %v507 = vsub.s32 %v504, %v506
        %v508 = vrot.slane %v491, %v507
        %v509 = vcombine.low %v500, %v508
        %v510 = vcombine.high %v500, %v508
        %v512 = vunpack.c.l.s4 1934713408
        %v513 = vunpack.c.0.s8 %v512
        %v514 = vlaneseq
        %v515 = vshrl.u32 %v514, 7
        %v516 = vsub.s32 %v513, %v515
        %v517 = vrot.slane %v509, %v516
        %v519 = vunpack.c.l.s4 1934713408
        %v520 = vunpack.c.0.s8 %v519
        %v521 = vlaneseq
        %v522 = vshrl.u32 %v521, 7
        %v523 = vsub.s32 %v520, %v522
        %v524 = vrot.slane %v510, %v523
        %v525 = vcombine.high %v517, 0
        %v526 = vcombine.high %v524, 0
        %v529 = vunpack.c.l.s4 1983009808
        %v530 = vunpack.c.0.s8 %v529
        %v531 = vlaneseq
        %v532 = vshrl.u32 %v531, 7
        %v533 = vsub.s32 %v530, %v532
        %v534 = vrot.slane %v489, %v533
        %v537 = vunpack.c.l.s4 1983009808
        %v538 = vunpack.c.0.s8 %v537
        %v539 = vlaneseq
        %v540 = vshrl.u32 %v539, 7
        %v541 = vsub.s32 %v538, %v540
        %v542 = vrot.slane %v493, %v541
        %v543 = vcombine.low %v534, %v542
        %v544 = vcombine.high %v534, %v542
        %v546 = vunpack.c.l.s4 1934713408
        %v547 = vunpack.c.0.s8 %v546
        %v548 = vlaneseq
        %v549 = vshrl.u32 %v548, 7
        %v550 = vsub.s32 %v547, %v549
        %v551 = vrot.slane %v543, %v550
        %v553 = vunpack.c.l.s4 1934713408
        %v554 = vunpack.c.0.s8 %v553
        %v555 = vlaneseq
        %v556 = vshrl.u32 %v555, 7
        %v557 = vsub.s32 %v554, %v556
        %v558 = vrot.slane %v544, %v557
        %v559 = vcombine.high %v551, 0
        %v560 = vcombine.high %v558, 0
        %v563 = vpack.i.b16 %v551, %v517
        %v565 = vshrl.u32 %v517, 16
        %v566 = vshrl.u32 %v551, 16
        %v567 = vpack.i.b16 %v566, %v565
        %v571 = vpack.i.b16 %v559, %v525
        %v573 = vshrl.u32 %v525, 16
        %v574 = vshrl.u32 %v559, 16
        %v575 = vpack.i.b16 %v574, %v573
        %v579 = vpack.i.b16 %v558, %v524
        %v581 = vshrl.u32 %v524, 16
        %v582 = vshrl.u32 %v558, 16
        %v583 = vpack.i.b16 %v582, %v581
        %v587 = vpack.i.b16 %v560, %v526
        %v589 = vshrl.u32 %v526, 16
        %v590 = vshrl.u32 %v560, 16
        %v591 = vpack.i.b16 %v590, %v589
        %v593 = vcombine.low %v563, %v579
        %v595 = vunpack.c.l.s4 1983009808
        %v596 = vunpack.c.0.s8 %v595
        %v597 = vlaneseq
        %v598 = vshrl.u32 %v597, 7
        %v599 = vsub.s32 %v596, %v598
        %v600 = vrot.slane %v593, %v599
        %v601 = vcombine.low %v571, %v587
        %v603 = vunpack.c.l.s4 1983009808
        %v604 = vunpack.c.0.s8 %v603
        %v605 = vlaneseq
        %v606 = vshrl.u32 %v605, 7
        %v607 = vsub.s32 %v604, %v606
        %v608 = vrot.slane %v601, %v607
        %v609 = vcombine.low %v600, %v608
        %v611 = vunpack.c.l.s4 1934713408
        %v612 = vunpack.c.0.s8 %v611
        %v613 = vlaneseq
        %v614 = vshrl.u32 %v613, 7
        %v615 = vsub.s32 %v612, %v614
        %v616 = vrot.slane %v609, %v615
        %v617 = vcombine.high %v616, 0
        %v618 = vcombine.low %v567, %v583
        %v620 = vunpack.c.l.s4 1983009808
        %v621 = vunpack.c.0.s8 %v620
        %v622 = vlaneseq
        %v623 = vshrl.u32 %v622, 7
        %v624 = vsub.s32 %v621, %v623
        %v625 = vrot.slane %v618, %v624
        %v626 = vcombine.low %v575, %v591
        %v628 = vunpack.c.l.s4 1983009808
        %v629 = vunpack.c.0.s8 %v628
        %v630 = vlaneseq
        %v631 = vshrl.u32 %v630, 7
        %v632 = vsub.s32 %v629, %v631
        %v633 = vrot.slane %v626, %v632
        %v634 = vcombine.low %v625, %v633
        %v636 = vunpack.c.l.s4 1934713408
        %v637 = vunpack.c.0.s8 %v636
        %v638 = vlaneseq
        %v639 = vshrl.u32 %v638, 7
        %v640 = vsub.s32 %v637, %v639
        %v641 = vrot.slane %v634, %v640
        %v642 = vcombine.high %v641, 0
        %v645 = vpack.i.b16 %v641, %v616
        %v647 = vshrl.u32 %v616, 16
        %v648 = vshrl.u32 %v641, 16
        %v649 = vpack.i.b16 %v648, %v647
        %v653 = vpack.i.b16 %v642, %v617
        %v655 = vshrl.u32 %v617, 16
        %v656 = vshrl.u32 %v642, 16
        %v657 = vpack.i.b16 %v656, %v655
        %vm659 = vcmask 60416
        %660 = vst.msk [vmem:[%s370] sm:$0xf] %vm659, %v645
        %661 = vst.msk [vmem:[%s370 + $0x4] sm:$0xf] %vm659, %v649
        %662 = vst.msk [vmem:[%s370 + $0x8] sm:$0xf] %vm659, %v653
        %663 = vst.msk [vmem:[%s370 + $0xc] sm:$0xf] %vm659, %v657
        %v664 = vpack.c.bf16 %v480, %v480
        %666 = vrot.lane.b32.xlu0 %v664, 120
        %v667 = vpop.permute.xlu0 %666
        %668 = vrot.lane.b32.xlu0 %v664, 112
        %v669 = vpop.permute.xlu0 %668
        %670 = vrot.lane.b32.xlu0 %v664, 104
        %v671 = vpop.permute.xlu0 %670
        %672 = vrot.lane.b32.xlu0 %v664, 96
        %v673 = vpop.permute.xlu0 %672
        %674 = vrot.lane.b32.xlu0 %v667, 96
        %v675 = vpop.permute.xlu0 %674
        %676 = vrot.lane.b32.xlu0 %v669, 96
        %v677 = vpop.permute.xlu0 %676
        %678 = vrot.lane.b32.xlu0 %v671, 96
        %v679 = vpop.permute.xlu0 %678
        %v682 = vunpack.c.l.s4 1983009808
        %v683 = vunpack.c.0.s8 %v682
        %v684 = vlaneseq
        %v685 = vshrl.u32 %v684, 7
        %v686 = vsub.s32 %v683, %v685
        %v687 = vrot.slane %v673, %v686
        %v690 = vunpack.c.l.s4 1983009808
        %v691 = vunpack.c.0.s8 %v690
        %v692 = vlaneseq
        %v693 = vshrl.u32 %v692, 7
        %v694 = vsub.s32 %v691, %v693
        %v695 = vrot.slane %v677, %v694
        %v696 = vcombine.low %v687, %v695
        %v697 = vcombine.high %v687, %v695
        %v699 = vunpack.c.l.s4 1934713408
        %v700 = vunpack.c.0.s8 %v699
        %v701 = vlaneseq
        %v702 = vshrl.u32 %v701, 7
        %v703 = vsub.s32 %v700, %v702
        %v704 = vrot.slane %v696, %v703
        %v706 = vunpack.c.l.s4 1934713408
        %v707 = vunpack.c.0.s8 %v706
        %v708 = vlaneseq
        %v709 = vshrl.u32 %v708, 7
        %v710 = vsub.s32 %v707, %v709
        %v711 = vrot.slane %v697, %v710
        %v712 = vcombine.high %v704, 0
        %v713 = vcombine.high %v711, 0
        %v716 = vunpack.c.l.s4 1983009808
        %v717 = vunpack.c.0.s8 %v716
        %v718 = vlaneseq
        %v719 = vshrl.u32 %v718, 7
        %v720 = vsub.s32 %v717, %v719
        %v721 = vrot.slane %v675, %v720
        %v724 = vunpack.c.l.s4 1983009808
        %v725 = vunpack.c.0.s8 %v724
        %v726 = vlaneseq
        %v727 = vshrl.u32 %v726, 7
        %v728 = vsub.s32 %v725, %v727
        %v729 = vrot.slane %v679, %v728
        %v730 = vcombine.low %v721, %v729
        %v731 = vcombine.high %v721, %v729
        %v733 = vunpack.c.l.s4 1934713408
        %v734 = vunpack.c.0.s8 %v733
        %v735 = vlaneseq
        %v736 = vshrl.u32 %v735, 7
        %v737 = vsub.s32 %v734, %v736
        %v738 = vrot.slane %v730, %v737
        %v740 = vunpack.c.l.s4 1934713408
        %v741 = vunpack.c.0.s8 %v740
        %v742 = vlaneseq
        %v743 = vshrl.u32 %v742, 7
        %v744 = vsub.s32 %v741, %v743
        %v745 = vrot.slane %v731, %v744
        %v746 = vcombine.high %v738, 0
        %v747 = vcombine.high %v745, 0
        %v750 = vpack.i.b16 %v738, %v704
        %v752 = vshrl.u32 %v704, 16
        %v753 = vshrl.u32 %v738, 16
        %v754 = vpack.i.b16 %v753, %v752
        %v758 = vpack.i.b16 %v746, %v712
        %v760 = vshrl.u32 %v712, 16
        %v761 = vshrl.u32 %v746, 16
        %v762 = vpack.i.b16 %v761, %v760
        %v766 = vpack.i.b16 %v745, %v711
        %v768 = vshrl.u32 %v711, 16
        %v769 = vshrl.u32 %v745, 16
        %v770 = vpack.i.b16 %v769, %v768
        %v774 = vpack.i.b16 %v747, %v713
        %v776 = vshrl.u32 %v713, 16
        %v777 = vshrl.u32 %v747, 16
        %v778 = vpack.i.b16 %v777, %v776
        %v780 = vcombine.low %v750, %v766
        %v782 = vunpack.c.l.s4 1983009808
        %v783 = vunpack.c.0.s8 %v782
        %v784 = vlaneseq
        %v785 = vshrl.u32 %v784, 7
        %v786 = vsub.s32 %v783, %v785
        %v787 = vrot.slane %v780, %v786
        %v788 = vcombine.low %v758, %v774
        %v790 = vunpack.c.l.s4 1983009808
        %v791 = vunpack.c.0.s8 %v790
        %v792 = vlaneseq
        %v793 = vshrl.u32 %v792, 7
        %v794 = vsub.s32 %v791, %v793
        %v795 = vrot.slane %v788, %v794
        %v796 = vcombine.low %v787, %v795
        %v798 = vunpack.c.l.s4 1934713408
        %v799 = vunpack.c.0.s8 %v798
        %v800 = vlaneseq
        %v801 = vshrl.u32 %v800, 7
        %v802 = vsub.s32 %v799, %v801
        %v803 = vrot.slane %v796, %v802
        %v804 = vcombine.high %v803, 0
        %v805 = vcombine.low %v754, %v770
        %v807 = vunpack.c.l.s4 1983009808
        %v808 = vunpack.c.0.s8 %v807
        %v809 = vlaneseq
        %v810 = vshrl.u32 %v809, 7
        %v811 = vsub.s32 %v808, %v810
        %v812 = vrot.slane %v805, %v811
        %v813 = vcombine.low %v762, %v778
        %v815 = vunpack.c.l.s4 1983009808
        %v816 = vunpack.c.0.s8 %v815
        %v817 = vlaneseq
        %v818 = vshrl.u32 %v817, 7
        %v819 = vsub.s32 %v816, %v818
        %v820 = vrot.slane %v813, %v819
        %v821 = vcombine.low %v812, %v820
        %v823 = vunpack.c.l.s4 1934713408
        %v824 = vunpack.c.0.s8 %v823
        %v825 = vlaneseq
        %v826 = vshrl.u32 %v825, 7
        %v827 = vsub.s32 %v824, %v826
        %v828 = vrot.slane %v821, %v827
        %v829 = vcombine.high %v828, 0
        %v832 = vpack.i.b16 %v828, %v803
        %v834 = vshrl.u32 %v803, 16
        %v835 = vshrl.u32 %v828, 16
        %v836 = vpack.i.b16 %v835, %v834
        %v840 = vpack.i.b16 %v829, %v804
        %v842 = vshrl.u32 %v804, 16
        %v843 = vshrl.u32 %v829, 16
        %v844 = vpack.i.b16 %v843, %v842
        %846 = vst.msk [vmem:[%s377] sm:$0xf] %vm659, %v832
        %847 = vst.msk [vmem:[%s377 + $0x4] sm:$0xf] %vm659, %v836
        %848 = vst.msk [vmem:[%s377 + $0x8] sm:$0xf] %vm659, %v840
        %849 = vst.msk [vmem:[%s377 + $0xc] sm:$0xf] %vm659, %v844
        %850 = vrot.lane.b32.xlu0 %v664, 64
        %v851 = vpop.permute.xlu0 %850
        %852 = vrot.lane.b32.xlu0 %v667, 64
        %v853 = vpop.permute.xlu0 %852
        %854 = vrot.lane.b32.xlu0 %v669, 64
        %v855 = vpop.permute.xlu0 %854
        %856 = vrot.lane.b32.xlu0 %v671, 64
        %v857 = vpop.permute.xlu0 %856
        %v860 = vunpack.c.l.s4 1983009808
        %v861 = vunpack.c.0.s8 %v860
        %v862 = vlaneseq
        %v863 = vshrl.u32 %v862, 7
        %v864 = vsub.s32 %v861, %v863
        %v865 = vrot.slane %v851, %v864
        %v868 = vunpack.c.l.s4 1983009808
        %v869 = vunpack.c.0.s8 %v868
        %v870 = vlaneseq
        %v871 = vshrl.u32 %v870, 7
        %v872 = vsub.s32 %v869, %v871
        %v873 = vrot.slane %v855, %v872
        %v874 = vcombine.low %v865, %v873
        %v875 = vcombine.high %v865, %v873
        %v877 = vunpack.c.l.s4 1934713408
        %v878 = vunpack.c.0.s8 %v877
        %v879 = vlaneseq
        %v880 = vshrl.u32 %v879, 7
        %v881 = vsub.s32 %v878, %v880
        %v882 = vrot.slane %v874, %v881
        %v884 = vunpack.c.l.s4 1934713408
        %v885 = vunpack.c.0.s8 %v884
        %v886 = vlaneseq
        %v887 = vshrl.u32 %v886, 7
        %v888 = vsub.s32 %v885, %v887
        %v889 = vrot.slane %v875, %v888
        %v890 = vcombine.high %v882, 0
        %v891 = vcombine.high %v889, 0
        %v894 = vunpack.c.l.s4 1983009808
        %v895 = vunpack.c.0.s8 %v894
        %v896 = vlaneseq
        %v897 = vshrl.u32 %v896, 7
        %v898 = vsub.s32 %v895, %v897
        %v899 = vrot.slane %v853, %v898
        %v902 = vunpack.c.l.s4 1983009808
        %v903 = vunpack.c.0.s8 %v902
        %v904 = vlaneseq
        %v905 = vshrl.u32 %v904, 7
        %v906 = vsub.s32 %v903, %v905
        %v907 = vrot.slane %v857, %v906
        %v908 = vcombine.low %v899, %v907
        %v909 = vcombine.high %v899, %v907
        %v911 = vunpack.c.l.s4 1934713408
        %v912 = vunpack.c.0.s8 %v911
        %v913 = vlaneseq
        %v914 = vshrl.u32 %v913, 7
        %v915 = vsub.s32 %v912, %v914
        %v916 = vrot.slane %v908, %v915
        %v918 = vunpack.c.l.s4 1934713408
        %v919 = vunpack.c.0.s8 %v918
        %v920 = vlaneseq
        %v921 = vshrl.u32 %v920, 7
        %v922 = vsub.s32 %v919, %v921
        %v923 = vrot.slane %v909, %v922
        %v924 = vcombine.high %v916, 0
        %v925 = vcombine.high %v923, 0
        %v928 = vpack.i.b16 %v916, %v882
        %v930 = vshrl.u32 %v882, 16
        %v931 = vshrl.u32 %v916, 16
        %v932 = vpack.i.b16 %v931, %v930
        %v936 = vpack.i.b16 %v924, %v890
        %v938 = vshrl.u32 %v890, 16
        %v939 = vshrl.u32 %v924, 16
        %v940 = vpack.i.b16 %v939, %v938
        %v944 = vpack.i.b16 %v923, %v889
        %v946 = vshrl.u32 %v889, 16
        %v947 = vshrl.u32 %v923, 16
        %v948 = vpack.i.b16 %v947, %v946
        %v952 = vpack.i.b16 %v925, %v891
        %v954 = vshrl.u32 %v891, 16
        %v955 = vshrl.u32 %v925, 16
        %v956 = vpack.i.b16 %v955, %v954
        %v958 = vcombine.low %v928, %v944
        %v960 = vunpack.c.l.s4 1983009808
        %v961 = vunpack.c.0.s8 %v960
        %v962 = vlaneseq
        %v963 = vshrl.u32 %v962, 7
        %v964 = vsub.s32 %v961, %v963
        %v965 = vrot.slane %v958, %v964
        %v966 = vcombine.low %v936, %v952
        %v968 = vunpack.c.l.s4 1983009808
        %v969 = vunpack.c.0.s8 %v968
        %v970 = vlaneseq
        %v971 = vshrl.u32 %v970, 7
        %v972 = vsub.s32 %v969, %v971
        %v973 = vrot.slane %v966, %v972
        %v974 = vcombine.low %v965, %v973
        %v976 = vunpack.c.l.s4 1934713408
        %v977 = vunpack.c.0.s8 %v976
        %v978 = vlaneseq
        %v979 = vshrl.u32 %v978, 7
        %v980 = vsub.s32 %v977, %v979
        %v981 = vrot.slane %v974, %v980
        %v982 = vcombine.high %v981, 0
        %v983 = vcombine.low %v932, %v948
        %v985 = vunpack.c.l.s4 1983009808
        %v986 = vunpack.c.0.s8 %v985
        %v987 = vlaneseq
        %v988 = vshrl.u32 %v987, 7
        %v989 = vsub.s32 %v986, %v988
        %v990 = vrot.slane %v983, %v989
        %v991 = vcombine.low %v940, %v956
        %v993 = vunpack.c.l.s4 1983009808
        %v994 = vunpack.c.0.s8 %v993
        %v995 = vlaneseq
        %v996 = vshrl.u32 %v995, 7
        %v997 = vsub.s32 %v994, %v996
        %v998 = vrot.slane %v991, %v997
        %v999 = vcombine.low %v990, %v998
        %v1001 = vunpack.c.l.s4 1934713408
        %v1002 = vunpack.c.0.s8 %v1001
        %v1003 = vlaneseq
        %v1004 = vshrl.u32 %v1003, 7
        %v1005 = vsub.s32 %v1002, %v1004
        %v1006 = vrot.slane %v999, %v1005
        %v1007 = vcombine.high %v1006, 0
        %v1010 = vpack.i.b16 %v1006, %v981
        %v1012 = vshrl.u32 %v981, 16
        %v1013 = vshrl.u32 %v1006, 16
        %v1014 = vpack.i.b16 %v1013, %v1012
        %v1018 = vpack.i.b16 %v1007, %v982
        %v1020 = vshrl.u32 %v982, 16
        %v1021 = vshrl.u32 %v1007, 16
        %v1022 = vpack.i.b16 %v1021, %v1020
        %1024 = vst.msk [vmem:[%s384] sm:$0xf] %vm659, %v1010
        %1025 = vst.msk [vmem:[%s384 + $0x4] sm:$0xf] %vm659, %v1014
        %1026 = vst.msk [vmem:[%s384 + $0x8] sm:$0xf] %vm659, %v1018
        %1027 = vst.msk [vmem:[%s384 + $0xc] sm:$0xf] %vm659, %v1022
        %s1028 = sand.u32 %s164, 1
        %s1029 = scalar_lea.sflag [#allocation4], %s1028
        %s1030 = sand.u32 %s164, 1
        %s1031 = smul.addr %s1030, 16
        %s1032 = scalar_lea.vmem [#allocation11], %s1031
        %s1033 = sand.u32 %s30, 1
        %s1034 = scalar_lea.sflag [#allocation13], %s1033
        %s1035 = sand.u32 %s192, 1
        %s1036 = smul.addr %s1035, 16
        %s1037 = scalar_lea.vmem [#allocation12], %s1036
        %s1038 = sand.u32 %s30, 1
        %s1039 = scalar_lea.sflag [#allocation13], %s1038
        %s1040 = sand.u32 %s220, 1
        %s1041 = smul.addr %s1040, 16
        %s1042 = scalar_lea.vmem [#allocation14], %s1041
        // Predicated region
        $region61: #{tpu_custom_call.1} parent=39 // pred_check
          %p1043 = pneg %p174
        $region62: #{tpu_custom_call.1} parent=39 // pred_check_branch
          %1045 = sbr.rel (%p1043) target = $region64
        $region63: #{tpu_custom_call.1} parent=39 // pred_region
          %s1047 = ssub.s32 256, 256
          %1048 = vsyncadd %s1029, %s1047
          %s1049 = smul.addr %s34, 4
          %s1050 = sadd.s32 %s35, %s1049
          %s1051 = smul.addr %s1050, 64
          %s1052 = scalar_lea.hbm %s5, %s1051
          %s1053 = sshll.u32 %s1032, 4
          %s1054 = int_to_ptr.vmem [resolvable:$true] %s1053
          %1059 = dma.vmem_to_hbm [thread:$0]  %s1054, 256, %s1052, %s1029, 64, 64, 4
        $region64: #{tpu_custom_call.1} parent=39 // pred_fallthru
          _
        // Predicated region
        $region65: #{tpu_custom_call.1} parent=39 // pred_check
          %p1060 = pneg %p202
        $region66: #{tpu_custom_call.1} parent=39 // pred_check_branch
          %1062 = sbr.rel (%p1060) target = $region68
        $region67: #{tpu_custom_call.1} parent=39 // pred_region
          %s1064 = ssub.s32 256, 256
          %1065 = vsyncadd %s1034, %s1064
          %s1066 = smul.addr %s34, 4
          %s1067 = sadd.s32 %s35, %s1066
          %s1068 = smul.addr %s1067, 64
          %s1069 = scalar_lea.hbm %s6, %s1068
          %s1070 = sshll.u32 %s1037, 4
          %s1071 = int_to_ptr.vmem [resolvable:$true] %s1070
          %1076 = dma.vmem_to_hbm [thread:$0]  %s1071, 256, %s1069, %s1034, 64, 64, 4
        $region68: #{tpu_custom_call.1} parent=39 // pred_fallthru
          _
        // Predicated region
        $region69: #{tpu_custom_call.1} parent=39 // pred_check
          %p1077 = pneg %p230
        $region70: #{tpu_custom_call.1} parent=39 // pred_check_branch
          %1079 = sbr.rel (%p1077) target = $region72
        $region71: #{tpu_custom_call.1} parent=39 // pred_region
          %s1081 = ssub.s32 256, 256
          %1082 = vsyncadd %s1039, %s1081
          %s1083 = smul.addr %s34, 4
          %s1084 = sadd.s32 %s35, %s1083
          %s1085 = smul.addr %s1084, 64
          %s1086 = scalar_lea.hbm %s7, %s1085
          %s1087 = sshll.u32 %s1042, 4
          %s1088 = int_to_ptr.vmem [resolvable:$true] %s1087
          %1093 = dma.vmem_to_hbm [thread:$0]  %s1088, 256, %s1086, %s1039, 64, 64, 4
        $region72: #{tpu_custom_call.1} parent=39 // pred_fallthru
          _
      $region40: #{tpu_custom_call.1} parent=5 // pred_fallthru
        _
      %p1094 = scmp.le.s32.totalorder 2, %s25
      // Predicated region
      $region73: #{tpu_custom_call.1} parent=5 // pred_check
        %p1095 = pneg %p1094
      $region74: #{tpu_custom_call.1} parent=5 // pred_check_branch
        %1097 = sbr.rel (%p1095) target = $region76
      $region75: #{tpu_custom_call.1} parent=5 // pred_region
        %s1098 = ssub.s32 %s25, 2
        // Predicated region
        $region77: #{tpu_custom_call.1} parent=75 // pred_check
          %p1099 = pneg %p180
        $region78: #{tpu_custom_call.1} parent=75 // pred_check_branch
          %1101 = sbr.rel (%p1099) target = $region80
        $region79: #{tpu_custom_call.1} parent=75 // pred_region
          %s1102 = sand.u32 %s165, 1
          %s1103 = scalar_lea.sflag [#allocation4], %s1102
          %s1104 = sand.u32 %s165, 1
          %s1105 = smul.addr %s1104, 16
          %s1106 = scalar_lea.vmem [#allocation11], %s1105
          %1107 = dma.done %s1103, 256
        $region80: #{tpu_custom_call.1} parent=75 // pred_fallthru
          _
        // Predicated region
        $region81: #{tpu_custom_call.1} parent=75 // pred_check
          %p1108 = pneg %p208
        $region82: #{tpu_custom_call.1} parent=75 // pred_check_branch
          %1110 = sbr.rel (%p1108) target = $region84
        $region83: #{tpu_custom_call.1} parent=75 // pred_region
          %s1111 = sand.u32 %s31, 1
          %s1112 = scalar_lea.sflag [#allocation13], %s1111
          %s1113 = sand.u32 %s193, 1
          %s1114 = smul.addr %s1113, 16
          %s1115 = scalar_lea.vmem [#allocation12], %s1114
          %1116 = dma.done %s1112, 256
        $region84: #{tpu_custom_call.1} parent=75 // pred_fallthru
          _
        // Predicated region
        $region85: #{tpu_custom_call.1} parent=75 // pred_check
          %p1117 = pneg %p236
        $region86: #{tpu_custom_call.1} parent=75 // pred_check_branch
          %1119 = sbr.rel (%p1117) target = $region88
        $region87: #{tpu_custom_call.1} parent=75 // pred_region
          %s1120 = sand.u32 %s31, 1
          %s1121 = scalar_lea.sflag [#allocation13], %s1120
          %s1122 = sand.u32 %s221, 1
          %s1123 = smul.addr %s1122, 16
          %s1124 = scalar_lea.vmem [#allocation14], %s1123
          %1125 = dma.done %s1121, 256
        $region88: #{tpu_custom_call.1} parent=75 // pred_fallthru
          _
      $region76: #{tpu_custom_call.1} parent=5 // pred_fallthru
        _
    $region6: #{tpu_custom_call.1} parent=1 // loop_footer
      %s29 = sadd.s32 1, %s25
    $region7: #{tpu_custom_call.1} parent=1 // loop_footer_branch
      %24 = sbr.rel target = $region3
    $region8: #{tpu_custom_call.1} parent=1 // loop_exit
      _
    %1126 = vsyncpa [#allocation3], 1
    %s1127 = scalar_lea.sflag [#allocation3], 1
    %1128 = vsyncpa %s1127, 1
    %1129 = vsyncpa [#allocation6], 1
    %1130 = vsyncpa [#allocation9], 1
    %1131 = vsyncpa [#allocation4], 1
    %s1132 = scalar_lea.sflag [#allocation4], 1
    %1133 = vsyncpa %s1132, 1
    %1134 = vsyncpa [#allocation13], 1
    %s1135 = scalar_lea.sflag [#allocation13], 1
    %1136 = vsyncpa %s1135, 1

// kernel: tpu_custom_call.1
$region0: #{tpu_custom_call.1}
  #allocation0 [shape = 'u32[]', space=smem, size = 0x4, offset = 0x4, fixed_abs, tag = 'smem constant byte address 0x4 - core index']
  #allocation1 [shape = 'u32[144,128]{1,0:T(1,128)}', space=vmem, size = 0x12000, scoped, tag = 'internal scratch']
  %s0 = inlined_call_operand.hbm [shape: f32[2,8,32], index: 0, kind: input, shape index: {}]
  %s1 = inlined_call_operand.hbm [shape: f32[1,32], index: 1, kind: input, shape index: {}]
  %s2 = inlined_call_operand.hbm [shape: f32[1,32], index: 2, kind: input, shape index: {}]
  %s3 = inlined_call_operand.hbm [shape: bf16[32,96], index: 3, kind: input, shape index: {}]
  %s4 = inlined_call_operand.hbm [shape: f32[1,96], index: 4, kind: input, shape index: {}]
  %s5 = inlined_call_operand.hbm [shape: bf16[2,4,8,8], index: 5, kind: output, shape index: {0}]
  %s6 = inlined_call_operand.hbm [shape: bf16[2,4,8,8], index: 6, kind: output, shape index: {1}]
  %s7 = inlined_call_operand.hbm [shape: bf16[2,4,8,8], index: 7, kind: output, shape index: {2}]
  %8 = xla_tuple %s5, %s6, %s7
  %s9 = sld [smem:[#allocation0]]
  $region89: #{tpu_custom_call.1} parent=0
    _
  %s11 = ssub.s32 1, %s9
  %s12 = scalar_select 0, %s11, %s9
  $region1: #{tpu_custom_call.1} parent=0
    #allocation2 [shape = 'u8[8192]{0}', space=vmem, size = 0x2000, scoped, tag = 'input window, operand 0']
    #allocation3 [shape = 's32[2]{0}', space=sflag, size = 0x8, scoped, tag = 'scoped memory for tpu_custom_call.1']
    #allocation4 [shape = 's32[2]{0}', space=sflag, size = 0x8, scoped, tag = 'scoped memory for tpu_custom_call.1']
    #allocation5 [shape = 'u8[512]{0}', space=vmem, size = 0x400, scoped, tag = 'input window, operand 1, single buffered']
    #allocation6 [shape = 's32[1]{0}', space=sflag, size = 0x4, scoped, tag = 'scoped memory for tpu_custom_call.1']
    #allocation7 [shape = 'u8[512]{0}', space=vmem, size = 0x400, scoped, tag = 'input window, operand 2, single buffered']
    #allocation8 [shape = 'u8[8192]{0}', space=vmem, size = 0x2000, scoped, tag = 'input window, operand 3, single buffered']
    #allocation9 [shape = 's32[1]{0}', space=sflag, size = 0x4, scoped, tag = 'scoped memory for tpu_custom_call.1']
    #allocation10 [shape = 'u8[512]{0}', space=vmem, size = 0x400, scoped, tag = 'input window, operand 4, single buffered']
    #allocation11 [shape = 'u8[16384]{0}', space=vmem, size = 0x4000, scoped, tag = 'output window, operand 0']
    #allocation12 [shape = 'u8[16384]{0}', space=vmem, size = 0x4000, scoped, tag = 'output window, operand 1']
    #allocation13 [shape = 's32[2]{0}', space=sflag, size = 0x8, scoped, tag = 'scoped memory for tpu_custom_call.1']
    #allocation14 [shape = 'u8[16384]{0}', space=vmem, size = 0x4000, scoped, tag = 'output window, operand 2']
    %13 = vsyncpa [#allocation3], 0
    %s14 = scalar_lea.sflag [#allocation3], 1
    %15 = vsyncpa %s14, 0
    %16 = vsyncpa [#allocation6], 0
    %17 = vsyncpa [#allocation9], 0
    %18 = vsyncpa [#allocation4], 0
    %s19 = scalar_lea.sflag [#allocation4], 1
    %20 = vsyncpa %s19, 0
    %21 = vsyncpa [#allocation13], 0
    %s22 = scalar_lea.sflag [#allocation13], 1
    %23 = vsyncpa %s22, 0
    loop: start=0, step=1, limit=4
    $region2: #{tpu_custom_call.1} parent=1 // loop_pre_header
      _
    $region3: #{tpu_custom_call.1} parent=1 // loop_header
      %s25 = sphi 0, %s29
      %p26 = scmp.ge.s32.totalorder %s25, 4
      %s32 = sphi 0, %s44
      %s33 = sphi 0, %s40
      %s34 = sphi 0, %s32
      %s35 = sphi 0, %s33
      %s36 = sphi 0, %s34
      %s37 = sphi 0, %s35
      %s49 = sphi 0, %s51
      %s52 = sphi 0, %s49
      %s53 = sphi 0, %s52
      %s69 = sphi 0, %s53
      %s73 = sphi 0, %s73
      %s75 = sphi 0, %s73
      %s76 = sphi 0, %s75
      %s90 = sphi 0, %s76
      %s94 = sphi 0, %s94
      %s96 = sphi 0, %s94
      %s97 = sphi 0, %s96
      %s111 = sphi 0, %s97
      %s115 = sphi 0, %s115
      %s117 = sphi 0, %s115
      %s118 = sphi 0, %s117
      %s132 = sphi 0, %s118
      %s136 = sphi 0, %s136
      %s138 = sphi 0, %s136
      %s139 = sphi 0, %s138
      %s153 = sphi 0, %s139
      %s161 = sphi 0, %s163
      %s164 = sphi 0, %s161
      %s165 = sphi 0, %s164
      %s181 = sphi 0, %s165
      %s189 = sphi 0, %s191
      %s192 = sphi 0, %s189
      %s193 = sphi 0, %s192
      %s209 = sphi 0, %s193
      %s217 = sphi 0, %s219
      %s220 = sphi 0, %s217
      %s221 = sphi 0, %s220
      %s237 = sphi 0, %s221
    $region4: #{tpu_custom_call.1} parent=1 // loop_header_branch
      %28 = sbr.rel (%p26) target = $region8
    $region5: #{tpu_custom_call.1} parent=1 // loop_body
      %s30 = ssub.s32 %s25, 1
      %s31 = ssub.s32 %s25, 2
      %s38 = sadd.s32 1, %s33
      %p39 = scmp.ge.s32.totalorder %s38, 1
      %s40 = scalar_select %p39, 0, %s38
      %s41 = sadd.s32 1, %s32
      %s42 = scalar_select %p39, %s41, %s32
      %p43 = scmp.ge.s32.totalorder %s42, 2
      %s44 = scalar_select %p43, 0, %s42
      %s45 = ssub.s32 %s32, %s44
      %s46 = ssub.s32 %s33, %s40
      %s47 = sor.u32 %s45, %s46
      %p48 = scmp.eq.s32.totalorder %s47, 0
      %s50 = sadd.s32 %s49, 1
      %s51 = scalar_select %p48, %s49, %s50
      %p54 = pneg %p48
      %p55 = scmp.eq.s32.totalorder %s25, 1
      %p56 = por %p54, %p55
      %p57 = scmp.ne.s32.totalorder %s49, %s52
      %p58 = scmp.eq.s32.totalorder %s25, 0
      %p59 = por %p57, %p58
      %p60 = scmp.ne.s32.totalorder %s49, %s52
      %p61 = scmp.eq.s32.totalorder %s30, 1
      %p62 = por %p60, %p61
      %p63 = scmp.ne.s32.totalorder %s52, %s53
      %p64 = scmp.eq.s32.totalorder %s30, 0
      %p65 = por %p63, %p64
      %p66 = scmp.ne.s32.totalorder %s52, %s53
      %p67 = scmp.eq.s32.totalorder %s31, 1
      %p68 = por %p66, %p67
      %p70 = scmp.ne.s32.totalorder %s53, %s69
      %p71 = scmp.eq.s32.totalorder %s31, 0
      %p72 = por %p70, %p71
      %s74 = sadd.s32 %s73, 1
      %p77 = scmp.eq.s32.totalorder %s25, 1
      %p78 = scmp.ne.s32.totalorder %s73, %s75
      %p79 = scmp.eq.s32.totalorder %s25, 0
      %p80 = por %p78, %p79
      %p81 = scmp.ne.s32.totalorder %s73, %s75
      %p82 = scmp.eq.s32.totalorder %s30, 1
      %p83 = por %p81, %p82
      %p84 = scmp.ne.s32.totalorder %s75, %s76
      %p85 = scmp.eq.s32.totalorder %s30, 0
      %p86 = por %p84, %p85
      %p87 = scmp.ne.s32.totalorder %s75, %s76
      %p88 = scmp.eq.s32.totalorder %s31, 1
      %p89 = por %p87, %p88
      %p91 = scmp.ne.s32.totalorder %s76, %s90
      %p92 = scmp.eq.s32.totalorder %s31, 0
      %p93 = por %p91, %p92
      %s95 = sadd.s32 %s94, 1
      %p98 = scmp.eq.s32.totalorder %s25, 1
      %p99 = scmp.ne.s32.totalorder %s94, %s96
      %p100 = scmp.eq.s32.totalorder %s25, 0
      %p101 = por %p99, %p100
      %p102 = scmp.ne.s32.totalorder %s94, %s96
      %p103 = scmp.eq.s32.totalorder %s30, 1
      %p104 = por %p102, %p103
      %p105 = scmp.ne.s32.totalorder %s96, %s97
      %p106 = scmp.eq.s32.totalorder %s30, 0
      %p107 = por %p105, %p106
      %p108 = scmp.ne.s32.totalorder %s96, %s97
      %p109 = scmp.eq.s32.totalorder %s31, 1
      %p110 = por %p108, %p109
      %p112 = scmp.ne.s32.totalorder %s97, %s111
      %p113 = scmp.eq.s32.totalorder %s31, 0
      %p114 = por %p112, %p113
      %s116 = sadd.s32 %s115, 1
      %p119 = scmp.eq.s32.totalorder %s25, 1
      %p120 = scmp.ne.s32.totalorder %s115, %s117
      %p121 = scmp.eq.s32.totalorder %s25, 0
      %p122 = por %p120, %p121
      %p123 = scmp.ne.s32.totalorder %s115, %s117
      %p124 = scmp.eq.s32.totalorder %s30, 1
      %p125 = por %p123, %p124
      %p126 = scmp.ne.s32.totalorder %s117, %s118
      %p127 = scmp.eq.s32.totalorder %s30, 0
      %p128 = por %p126, %p127
      %p129 = scmp.ne.s32.totalorder %s117, %s118
      %p130 = scmp.eq.s32.totalorder %s31, 1
      %p131 = por %p129, %p130
      %p133 = scmp.ne.s32.totalorder %s118, %s132
      %p134 = scmp.eq.s32.totalorder %s31, 0
      %p135 = por %p133, %p134
      %s137 = sadd.s32 %s136, 1
      %p140 = scmp.eq.s32.totalorder %s25, 1
      %p141 = scmp.ne.s32.totalorder %s136, %s138
      %p142 = scmp.eq.s32.totalorder %s25, 0
      %p143 = por %p141, %p142
      %p144 = scmp.ne.s32.totalorder %s136, %s138
      %p145 = scmp.eq.s32.totalorder %s30, 1
      %p146 = por %p144, %p145
      %p147 = scmp.ne.s32.totalorder %s138, %s139
      %p148 = scmp.eq.s32.totalorder %s30, 0
      %p149 = por %p147, %p148
      %p150 = scmp.ne.s32.totalorder %s138, %s139
      %p151 = scmp.eq.s32.totalorder %s31, 1
      %p152 = por %p150, %p151
      %p154 = scmp.ne.s32.totalorder %s139, %s153
      %p155 = scmp.eq.s32.totalorder %s31, 0
      %p156 = por %p154, %p155
      %s157 = ssub.s32 %s32, %s44
      %s158 = ssub.s32 %s33, %s40
      %s159 = sor.u32 %s157, %s158
      %p160 = scmp.eq.s32.totalorder %s159, 0
      %s162 = sadd.s32 %s161, 1
      %s163 = scalar_select %p160, %s161, %s162
      %p166 = pneg %p160
      %p167 = scmp.eq.s32.totalorder %s25, 1
      %p168 = por %p166, %p167
      %p169 = scmp.ne.s32.totalorder %s161, %s164
      %p170 = scmp.eq.s32.totalorder %s25, 0
      %p171 = por %p169, %p170
      %p172 = scmp.ne.s32.totalorder %s161, %s164
      %p173 = scmp.eq.s32.totalorder %s30, 1
      %p174 = por %p172, %p173
      %p175 = scmp.ne.s32.totalorder %s164, %s165
      %p176 = scmp.eq.s32.totalorder %s30, 0
      %p177 = por %p175, %p176
      %p178 = scmp.ne.s32.totalorder %s164, %s165
      %p179 = scmp.eq.s32.totalorder %s31, 1
      %p180 = por %p178, %p179
      %p182 = scmp.ne.s32.totalorder %s165, %s181
      %p183 = scmp.eq.s32.totalorder %s31, 0
      %p184 = por %p182, %p183
      %s185 = ssub.s32 %s32, %s44
      %s186 = ssub.s32 %s33, %s40
      %s187 = sor.u32 %s185, %s186
      %p188 = scmp.eq.s32.totalorder %s187, 0
      %s190 = sadd.s32 %s189, 1
      %s191 = scalar_select %p188, %s189, %s190
      %p194 = pneg %p188
      %p195 = scmp.eq.s32.totalorder %s25, 1
      %p196 = por %p194, %p195
      %p197 = scmp.ne.s32.totalorder %s189, %s192
      %p198 = scmp.eq.s32.totalorder %s25, 0
      %p199 = por %p197, %p198
      %p200 = scmp.ne.s32.totalorder %s189, %s192
      %p201 = scmp.eq.s32.totalorder %s30, 1
      %p202 = por %p200, %p201
      %p203 = scmp.ne.s32.totalorder %s192, %s193
      %p204 = scmp.eq.s32.totalorder %s30, 0
      %p205 = por %p203, %p204
      %p206 = scmp.ne.s32.totalorder %s192, %s193
      %p207 = scmp.eq.s32.totalorder %s31, 1
      %p208 = por %p206, %p207
      %p210 = scmp.ne.s32.totalorder %s193, %s209
      %p211 = scmp.eq.s32.totalorder %s31, 0
      %p212 = por %p210, %p211
      %s213 = ssub.s32 %s32, %s44
      %s214 = ssub.s32 %s33, %s40
      %s215 = sor.u32 %s213, %s214
      %p216 = scmp.eq.s32.totalorder %s215, 0
      %s218 = sadd.s32 %s217, 1
      %s219 = scalar_select %p216, %s217, %s218
      %p222 = pneg %p216
      %p223 = scmp.eq.s32.totalorder %s25, 1
      %p224 = por %p222, %p223
      %p225 = scmp.ne.s32.totalorder %s217, %s220
      %p226 = scmp.eq.s32.totalorder %s25, 0
      %p227 = por %p225, %p226
      %p228 = scmp.ne.s32.totalorder %s217, %s220
      %p229 = scmp.eq.s32.totalorder %s30, 1
      %p230 = por %p228, %p229
      %p231 = scmp.ne.s32.totalorder %s220, %s221
      %p232 = scmp.eq.s32.totalorder %s30, 0
      %p233 = por %p231, %p232
      %p234 = scmp.ne.s32.totalorder %s220, %s221
      %p235 = scmp.eq.s32.totalorder %s31, 1
      %p236 = por %p234, %p235
      %p238 = scmp.ne.s32.totalorder %s221, %s237
      %p239 = scmp.eq.s32.totalorder %s31, 0
      %p240 = por %p238, %p239
      %p241 = scmp.le.s32.totalorder 1, %s25
      %p242 = scmp.lt.s32.totalorder %s25, 3
      %p243 = pnand %p241, %p242
      %p244 = pneg %p243
      // Predicated region
      $region9: #{tpu_custom_call.1} parent=5 // pred_check
        _
      $region10: #{tpu_custom_call.1} parent=5 // pred_check_branch
        %246 = sbr.rel (%p243) target = $region12
      $region11: #{tpu_custom_call.1} parent=5 // pred_region
        %s247 = ssub.s32 %s25, 1
        // Predicated region
        $region13: #{tpu_custom_call.1} parent=11 // pred_check
          %p248 = pneg %p86
        $region14: #{tpu_custom_call.1} parent=11 // pred_check_branch
          %250 = sbr.rel (%p248) target = $region16
        $region15: #{tpu_custom_call.1} parent=11 // pred_region
          %s252 = ssub.s32 16, 16
          %253 = vsyncadd [#allocation6], %s252
          %s255 = sshll.u32 [#allocation5], 4
          %s256 = int_to_ptr.vmem [resolvable:$true] %s255
          %258 = dma.hbm_to_vmem [thread:$0]  %s1, 16, %s256, [#allocation6]
        $region16: #{tpu_custom_call.1} parent=11 // pred_fallthru
          _
        // Predicated region
        $region17: #{tpu_custom_call.1} parent=11 // pred_check
          %p259 = pneg %p107
        $region18: #{tpu_custom_call.1} parent=11 // pred_check_branch
          %261 = sbr.rel (%p259) target = $region20
        $region19: #{tpu_custom_call.1} parent=11 // pred_region
          %s263 = ssub.s32 16, 16
          %264 = vsyncadd [#allocation6], %s263
          %s266 = sshll.u32 [#allocation7], 4
          %s267 = int_to_ptr.vmem [resolvable:$true] %s266
          %269 = dma.hbm_to_vmem [thread:$0]  %s2, 16, %s267, [#allocation6]
        $region20: #{tpu_custom_call.1} parent=11 // pred_fallthru
          _
        // Predicated region
        $region21: #{tpu_custom_call.1} parent=11 // pred_check
          %p270 = pneg %p128
        $region22: #{tpu_custom_call.1} parent=11 // pred_check_branch
          %272 = sbr.rel (%p270) target = $region24
        $region23: #{tpu_custom_call.1} parent=11 // pred_region
          %s274 = ssub.s32 256, 256
          %275 = vsyncadd [#allocation9], %s274
          %s276 = sshll.u32 [#allocation8], 4
          %s277 = int_to_ptr.vmem [resolvable:$true] %s276
          %282 = dma.hbm_to_vmem [thread:$0]  %s3, 256, %s277, [#allocation9], 64, 64, 4
        $region24: #{tpu_custom_call.1} parent=11 // pred_fallthru
          _
        // Predicated region
        $region25: #{tpu_custom_call.1} parent=11 // pred_check
          %p283 = pneg %p149
        $region26: #{tpu_custom_call.1} parent=11 // pred_check_branch
          %285 = sbr.rel (%p283) target = $region28
        $region27: #{tpu_custom_call.1} parent=11 // pred_region
          %s287 = ssub.s32 16, 16
          %288 = vsyncadd [#allocation9], %s287
          %s290 = sshll.u32 [#allocation10], 4
          %s291 = int_to_ptr.vmem [resolvable:$true] %s290
          %293 = dma.hbm_to_vmem [thread:$0]  %s4, 16, %s291, [#allocation9]
        $region28: #{tpu_custom_call.1} parent=11 // pred_fallthru
          _
      $region12: #{tpu_custom_call.1} parent=5 // pred_fallthru
        _
      %p294 = scmp.lt.s32.totalorder %s25, 2
      // Predicated region
      $region29: #{tpu_custom_call.1} parent=5 // pred_check
        %p295 = pneg %p294
      $region30: #{tpu_custom_call.1} parent=5 // pred_check_branch
        %297 = sbr.rel (%p295) target = $region32
      $region31: #{tpu_custom_call.1} parent=5 // pred_region
        // Predicated region
        $region33: #{tpu_custom_call.1} parent=31 // pred_check
          %p298 = pneg %p59
        $region34: #{tpu_custom_call.1} parent=31 // pred_check_branch
          %300 = sbr.rel (%p298) target = $region36
        $region35: #{tpu_custom_call.1} parent=31 // pred_region
          %s301 = sand.u32 %s49, 1
          %s302 = scalar_lea.sflag [#allocation3], %s301
          %s303 = sand.u32 %s49, 1
          %s304 = smul.addr %s303, 8
          %s305 = scalar_lea.vmem [#allocation2], %s304
          %s307 = ssub.s32 128, 128
          %308 = vsyncadd %s302, %s307
          %s309 = sadd.s32 %s33, %s32
          %s310 = smul.addr %s309, 128
          %s311 = scalar_lea.hbm %s0, %s310
          %s313 = sshll.u32 %s305, 4
          %s314 = int_to_ptr.vmem [resolvable:$true] %s313
          %316 = dma.hbm_to_vmem [thread:$0]  %s311, 128, %s314, %s302
        $region36: #{tpu_custom_call.1} parent=31 // pred_fallthru
          _
      $region32: #{tpu_custom_call.1} parent=5 // pred_fallthru
        _
      %p317 = scmp.le.s32.totalorder 1, %s25
      %p318 = scmp.lt.s32.totalorder %s25, 3
      %p319 = pnand %p317, %p318
      %p320 = pneg %p319
      // Predicated region
      $region37: #{tpu_custom_call.1} parent=5 // pred_check
        _
      $region38: #{tpu_custom_call.1} parent=5 // pred_check_branch
        %322 = sbr.rel (%p319) target = $region40
      $region39: #{tpu_custom_call.1} parent=5 // pred_region
        %s323 = ssub.s32 %s25, 1
        %s324 = sand.u32 %s52, 1
        %s325 = scalar_lea.sflag [#allocation3], %s324
        %s326 = sand.u32 %s52, 1
        %s327 = smul.addr %s326, 8
        %s328 = scalar_lea.vmem [#allocation2], %s327
        // Predicated region
        $region41: #{tpu_custom_call.1} parent=39 // pred_check
          %p329 = pneg %p65
        $region42: #{tpu_custom_call.1} parent=39 // pred_check_branch
          %331 = sbr.rel (%p329) target = $region44
        $region43: #{tpu_custom_call.1} parent=39 // pred_region
          %332 = dma.done %s325, 128
        $region44: #{tpu_custom_call.1} parent=39 // pred_fallthru
          _
        // Predicated region
        $region45: #{tpu_custom_call.1} parent=39 // pred_check
          %p333 = pneg %p86
        $region46: #{tpu_custom_call.1} parent=39 // pred_check_branch
          %335 = sbr.rel (%p333) target = $region48
        $region47: #{tpu_custom_call.1} parent=39 // pred_region
          %336 = dma.done [#allocation6], 16
        $region48: #{tpu_custom_call.1} parent=39 // pred_fallthru
          _
        // Predicated region
        $region49: #{tpu_custom_call.1} parent=39 // pred_check
          %p337 = pneg %p107
        $region50: #{tpu_custom_call.1} parent=39 // pred_check_branch
          %339 = sbr.rel (%p337) target = $region52
        $region51: #{tpu_custom_call.1} parent=39 // pred_region
          %340 = dma.done [#allocation6], 16
        $region52: #{tpu_custom_call.1} parent=39 // pred_fallthru
          _
        // Predicated region
        $region53: #{tpu_custom_call.1} parent=39 // pred_check
          %p341 = pneg %p128
        $region54: #{tpu_custom_call.1} parent=39 // pred_check_branch
          %343 = sbr.rel (%p341) target = $region56
        $region55: #{tpu_custom_call.1} parent=39 // pred_region
          %344 = dma.done [#allocation9], 256
        $region56: #{tpu_custom_call.1} parent=39 // pred_fallthru
          _
        // Predicated region
        $region57: #{tpu_custom_call.1} parent=39 // pred_check
          %p345 = pneg %p149
        $region58: #{tpu_custom_call.1} parent=39 // pred_check_branch
          %347 = sbr.rel (%p345) target = $region60
        $region59: #{tpu_custom_call.1} parent=39 // pred_region
          %348 = dma.done [#allocation9], 16
        $region60: #{tpu_custom_call.1} parent=39 // pred_fallthru
          _
        %s349 = sand.u32 %s52, 1
        %s350 = scalar_lea.sflag [#allocation3], %s349
        %s351 = sand.u32 %s52, 1
        %s352 = smul.addr %s351, 8
        %s353 = scalar_lea.vmem [#allocation2], %s352
        %p354 = pneg %p65
        %p355 = pneg %p62
        %p356 = pneg %p86
        %p357 = pneg %p83
        %p358 = pneg %p107
        %p359 = pneg %p104
        %p360 = pneg %p128
        %p361 = pneg %p125
        %p362 = pneg %p149
        %p363 = pneg %p146
        %p364 = pneg %p177
        %p365 = pneg %p174
        %s366 = sand.u32 %s164, 1
        %s367 = scalar_lea.sflag [#allocation4], %s366
        %s368 = sand.u32 %s164, 1
        %s369 = smul.addr %s368, 16
        %s370 = scalar_lea.vmem [#allocation11], %s369
        %p371 = pneg %p205
        %p372 = pneg %p202
        %s373 = sand.u32 %s30, 1
        %s374 = scalar_lea.sflag [#allocation13], %s373
        %s375 = sand.u32 %s192, 1
        %s376 = smul.addr %s375, 16
        %s377 = scalar_lea.vmem [#allocation12], %s376
        %p378 = pneg %p233
        %p379 = pneg %p230
        %s380 = sand.u32 %s30, 1
        %s381 = scalar_lea.sflag [#allocation13], %s380
        %s382 = sand.u32 %s220, 1
        %s383 = smul.addr %s382, 16
        %s384 = scalar_lea.vmem [#allocation14], %s383
        %v386 = vld [vmem:[%s328] sm:$0xff]
        %v387 = vld [vmem:[#allocation5] sm:$0x1]
        %v388 = vld [vmem:[#allocation7] sm:$0x1]
        %vm389 = vcmask 261120
        %v390 = vsel %vm389, %v386, 0.0
        %391 = vadd.xlane.f32.xlu0 %v390
        %v392 = vpop.xlane.xlu0 %391
        %v393 = vrcp.pop 32.0
        %v394 = vmul.f32 %v392, %v393
        %v395 = vsub.f32 %v386, %v394
        %v396 = vmul.f32 %v395, %v395
        %v397 = vsel %vm389, %v396, 0.0
        %398 = vadd.xlane.f32.xlu0 %v397
        %v399 = vpop.xlane.xlu0 %398
        %v400 = vmul.f32 %v399, %v393
        %v401 = vadd.f32 %v400, 1e-05
        %v402 = vrsqrt.pop %v401
        %v403 = vmul.f32 %v395, %v402
        %v405 = vlaneseq
        %v406 = vshrl.u32 %v405, 7
        %v407 = vsub.s32 0, %v406
        %v408 = vrot.slane %v387, %v407
        %v410 = vmul.f32 %v403, %v408
        %v412 = vlaneseq
        %v413 = vshrl.u32 %v412, 7
        %v414 = vsub.s32 0, %v413
        %v415 = vrot.slane %v388, %v414
        %v417 = vadd.f32 %v410, %v415
        %v418 = vpack.c.bf16 %v417, %v417
        %v419 = vld [vmem:[#allocation8] sm:$0xf]
        %v420 = vld [vmem:[#allocation8 + $0x4] sm:$0xf]
        %v421 = vld [vmem:[#allocation8 + $0x8] sm:$0xf]
        %v422 = vld [vmem:[#allocation8 + $0xc] sm:$0xf]
        %v423 = vld [vmem:[#allocation10] sm:$0x1]
        %v425 = vlaneseq
        %v426 = vshrl.u32 %v425, 7
        %v427 = vsub.s32 0, %v426
        %v428 = vrot.slane %v423, %v427
        %v434 = vunpack.c.l.b16 %v419
        %v435 = vunpack.c.l.b16 %v420
        %v436 = vunpack.c.l.b16 %v421
        %v437 = vunpack.c.l.b16 %v422
        %v438 = vpack.c.b16 %v435, %v434
        %v439 = vpack.c.b16 %v437, %v436
        %v443 = vsel %vm389, %v418, 0
        %445 = vmatprep.subr.bf16.mxu0 0
        %446 = vmatpush1.bf16.msra.mxu0 %v438
        %447 = vmatprep.subr.bf16.mxu0 0
        %448 = vmatpush1.bf16.msra.mxu0 %v439
        %449 = vmatprep.subr.bf16.mxu0 0
        %450 = vmatpush1.bf16.msra.mxu0 0
        %451 = vmatprep.subr.bf16.mxu0 0
        %452 = vmatpush1.bf16.msra.mxu0 0
        %453 = vmatprep.subr.bf16.mxu0 0
        %454 = vmatpush1.bf16.msra.mxu0 0
        %455 = vmatprep.subr.bf16.mxu0 0
        %456 = vmatpush1.bf16.msra.mxu0 0
        %457 = vmatprep.subr.bf16.mxu0 0
        %458 = vmatpush1.bf16.msra.mxu0 0
        %459 = vmatprep.subr.bf16.mxu0 0
        %460 = vmatpush1.bf16.msra.mxu0 0
        %461 = vmatprep.subr.bf16.mxu0 0
        %462 = vmatpush1.bf16.msra.mxu0 0
        %463 = vmatprep.subr.bf16.mxu0 0
        %464 = vmatpush1.bf16.msra.mxu0 0
        %465 = vmatprep.subr.bf16.mxu0 0
        %466 = vmatpush1.bf16.msra.mxu0 0
        %467 = vmatprep.subr.bf16.mxu0 0
        %468 = vmatpush1.bf16.msra.mxu0 0
        %469 = vmatprep.subr.bf16.mxu0 0
        %470 = vmatpush1.bf16.msra.mxu0 0
        %471 = vmatprep.subr.bf16.mxu0 0
        %472 = vmatpush1.bf16.msra.mxu0 0
        %473 = vmatprep.subr.bf16.mxu0 0
        %474 = vmatpush1.bf16.msra.mxu0 0
        %475 = vmatprep.subr.bf16.mxu0 0
        %476 = vmatpush1.bf16.msra.mxu0 0
        %477 = vmatprep.mubr.bf16.mxu0 0
        %478 = vmatmul.mubr.bf16.gmra.mrb[0].mxu0 %v443
        %v479 = vpop.f32.mrb[0].mxu0
        %v480 = vadd.f32 %v428, %v479
        %v481 = vpop.f32.mrb[0].mxu0
        %v482 = vpop.f32.mrb[0].mxu0
        %v483 = vpop.f32.mrb[0].mxu0
        %484 = vdwg.mxu0
        %v485 = vmul.f32 %v480, 0.35355338
        %v486 = vpack.c.bf16 %v485, %v485
        %488 = vrot.lane.b32.xlu0 %v486, 120
        %v489 = vpop.permute.xlu0 %488
        %490 = vrot.lane.b32.xlu0 %v486, 112
        %v491 = vpop.permute.xlu0 %490
        %492 = vrot.lane.b32.xlu0 %v486, 104
        %v493 = vpop.permute.xlu0 %492
        %v495 = vunpack.c.l.s4 1983009808
        %v496 = vunpack.c.0.s8 %v495
        %v497 = vlaneseq
        %v498 = vshrl.u32 %v497, 7
        %v499 = vsub.s32 %v496, %v498
        %v500 = vrot.slane %v486, %v499
        %v503 = vunpack.c.l.s4 1983009808
        %v504 = vunpack.c.0.s8 %v503
        %v505 = vlaneseq
        %v506 = vshrl.u32 %v505, 7
        %v507 = vsub.s32 %v504, %v506
        %v508 = vrot.slane %v491, %v507
        %v509 = vcombine.low %v500, %v508
        %v510 = vcombine.high %v500, %v508
        %v512 = vunpack.c.l.s4 1934713408
        %v513 = vunpack.c.0.s8 %v512
        %v514 = vlaneseq
        %v515 = vshrl.u32 %v514, 7
        %v516 = vsub.s32 %v513, %v515
        %v517 = vrot.slane %v509, %v516
        %v519 = vunpack.c.l.s4 1934713408
        %v520 = vunpack.c.0.s8 %v519
        %v521 = vlaneseq
        %v522 = vshrl.u32 %v521, 7
        %v523 = vsub.s32 %v520, %v522
        %v524 = vrot.slane %v510, %v523
        %v525 = vcombine.high %v517, 0
        %v526 = vcombine.high %v524, 0
        %v529 = vunpack.c.l.s4 1983009808
        %v530 = vunpack.c.0.s8 %v529
        %v531 = vlaneseq
        %v532 = vshrl.u32 %v531, 7
        %v533 = vsub.s32 %v530, %v532
        %v534 = vrot.slane %v489, %v533
        %v537 = vunpack.c.l.s4 1983009808
        %v538 = vunpack.c.0.s8 %v537
        %v539 = vlaneseq
        %v540 = vshrl.u32 %v539, 7
        %v541 = vsub.s32 %v538, %v540
        %v542 = vrot.slane %v493, %v541
        %v543 = vcombine.low %v534, %v542
        %v544 = vcombine.high %v534, %v542
        %v546 = vunpack.c.l.s4 1934713408
        %v547 = vunpack.c.0.s8 %v546
        %v548 = vlaneseq
        %v549 = vshrl.u32 %v548, 7
        %v550 = vsub.s32 %v547, %v549
        %v551 = vrot.slane %v543, %v550
        %v553 = vunpack.c.l.s4 1934713408
        %v554 = vunpack.c.0.s8 %v553
        %v555 = vlaneseq
        %v556 = vshrl.u32 %v555, 7
        %v557 = vsub.s32 %v554, %v556
        %v558 = vrot.slane %v544, %v557
        %v559 = vcombine.high %v551, 0
        %v560 = vcombine.high %v558, 0
        %v563 = vpack.i.b16 %v551, %v517
        %v565 = vshrl.u32 %v517, 16
        %v566 = vshrl.u32 %v551, 16
        %v567 = vpack.i.b16 %v566, %v565
        %v571 = vpack.i.b16 %v559, %v525
        %v573 = vshrl.u32 %v525, 16
        %v574 = vshrl.u32 %v559, 16
        %v575 = vpack.i.b16 %v574, %v573
        %v579 = vpack.i.b16 %v558, %v524
        %v581 = vshrl.u32 %v524, 16
        %v582 = vshrl.u32 %v558, 16
        %v583 = vpack.i.b16 %v582, %v581
        %v587 = vpack.i.b16 %v560, %v526
        %v589 = vshrl.u32 %v526, 16
        %v590 = vshrl.u32 %v560, 16
        %v591 = vpack.i.b16 %v590, %v589
        %v593 = vcombine.low %v563, %v579
        %v595 = vunpack.c.l.s4 1983009808
        %v596 = vunpack.c.0.s8 %v595
        %v597 = vlaneseq
        %v598 = vshrl.u32 %v597, 7
        %v599 = vsub.s32 %v596, %v598
        %v600 = vrot.slane %v593, %v599
        %v601 = vcombine.low %v571, %v587
        %v603 = vunpack.c.l.s4 1983009808
        %v604 = vunpack.c.0.s8 %v603
        %v605 = vlaneseq
        %v606 = vshrl.u32 %v605, 7
        %v607 = vsub.s32 %v604, %v606
        %v608 = vrot.slane %v601, %v607
        %v609 = vcombine.low %v600, %v608
        %v611 = vunpack.c.l.s4 1934713408
        %v612 = vunpack.c.0.s8 %v611
        %v613 = vlaneseq
        %v614 = vshrl.u32 %v613, 7
        %v615 = vsub.s32 %v612, %v614
        %v616 = vrot.slane %v609, %v615
        %v617 = vcombine.high %v616, 0
        %v618 = vcombine.low %v567, %v583
        %v620 = vunpack.c.l.s4 1983009808
        %v621 = vunpack.c.0.s8 %v620
        %v622 = vlaneseq
        %v623 = vshrl.u32 %v622, 7
        %v624 = vsub.s32 %v621, %v623
        %v625 = vrot.slane %v618, %v624
        %v626 = vcombine.low %v575, %v591
        %v628 = vunpack.c.l.s4 1983009808
        %v629 = vunpack.c.0.s8 %v628
        %v630 = vlaneseq
        %v631 = vshrl.u32 %v630, 7
        %v632 = vsub.s32 %v629, %v631
        %v633 = vrot.slane %v626, %v632
        %v634 = vcombine.low %v625, %v633
        %v636 = vunpack.c.l.s4 1934713408
        %v637 = vunpack.c.0.s8 %v636
        %v638 = vlaneseq
        %v639 = vshrl.u32 %v638, 7
        %v640 = vsub.s32 %v637, %v639
        %v641 = vrot.slane %v634, %v640
        %v642 = vcombine.high %v641, 0
        %v645 = vpack.i.b16 %v641, %v616
        %v647 = vshrl.u32 %v616, 16
        %v648 = vshrl.u32 %v641, 16
        %v649 = vpack.i.b16 %v648, %v647
        %v653 = vpack.i.b16 %v642, %v617
        %v655 = vshrl.u32 %v617, 16
        %v656 = vshrl.u32 %v642, 16
        %v657 = vpack.i.b16 %v656, %v655
        %vm659 = vcmask 60416
        %660 = vst.msk [vmem:[%s370] sm:$0xf] %vm659, %v645
        %661 = vst.msk [vmem:[%s370 + $0x4] sm:$0xf] %vm659, %v649
        %662 = vst.msk [vmem:[%s370 + $0x8] sm:$0xf] %vm659, %v653
        %663 = vst.msk [vmem:[%s370 + $0xc] sm:$0xf] %vm659, %v657
        %v664 = vpack.c.bf16 %v480, %v480
        %666 = vrot.lane.b32.xlu0 %v664, 120
        %v667 = vpop.permute.xlu0 %666
        %668 = vrot.lane.b32.xlu0 %v664, 112
        %v669 = vpop.permute.xlu0 %668
        %670 = vrot.lane.b32.xlu0 %v664, 104
        %v671 = vpop.permute.xlu0 %670
        %672 = vrot.lane.b32.xlu0 %v664, 96
        %v673 = vpop.permute.xlu0 %672
        %674 = vrot.lane.b32.xlu0 %v667, 96
        %v675 = vpop.permute.xlu0 %674
        %676 = vrot.lane.b32.xlu0 %v669, 96
        %v677 = vpop.permute.xlu0 %676
        %678 = vrot.lane.b32.xlu0 %v671, 96
        %v679 = vpop.permute.xlu0 %678
        %v682 = vunpack.c.l.s4 1983009808
        %v683 = vunpack.c.0.s8 %v682
        %v684 = vlaneseq
        %v685 = vshrl.u32 %v684, 7
        %v686 = vsub.s32 %v683, %v685
        %v687 = vrot.slane %v673, %v686
        %v690 = vunpack.c.l.s4 1983009808
        %v691 = vunpack.c.0.s8 %v690
        %v692 = vlaneseq
        %v693 = vshrl.u32 %v692, 7
        %v694 = vsub.s32 %v691, %v693
        %v695 = vrot.slane %v677, %v694
        %v696 = vcombine.low %v687, %v695
        %v697 = vcombine.high %v687, %v695
        %v699 = vunpack.c.l.s4 1934713408
        %v700 = vunpack.c.0.s8 %v699
        %v701 = vlaneseq
        %v702 = vshrl.u32 %v701, 7
        %v703 = vsub.s32 %v700, %v702
        %v704 = vrot.slane %v696, %v703
        %v706 = vunpack.c.l.s4 1934713408
        %v707 = vunpack.c.0.s8 %v706
        %v708 = vlaneseq
        %v709 = vshrl.u32 %v708, 7
        %v710 = vsub.s32 %v707, %v709
        %v711 = vrot.slane %v697, %v710
        %v712 = vcombine.high %v704, 0
        %v713 = vcombine.high %v711, 0
        %v716 = vunpack.c.l.s4 1983009808
        %v717 = vunpack.c.0.s8 %v716
        %v718 = vlaneseq
        %v719 = vshrl.u32 %v718, 7
        %v720 = vsub.s32 %v717, %v719
        %v721 = vrot.slane %v675, %v720
        %v724 = vunpack.c.l.s4 1983009808
        %v725 = vunpack.c.0.s8 %v724
        %v726 = vlaneseq
        %v727 = vshrl.u32 %v726, 7
        %v728 = vsub.s32 %v725, %v727
        %v729 = vrot.slane %v679, %v728
        %v730 = vcombine.low %v721, %v729
        %v731 = vcombine.high %v721, %v729
        %v733 = vunpack.c.l.s4 1934713408
        %v734 = vunpack.c.0.s8 %v733
        %v735 = vlaneseq
        %v736 = vshrl.u32 %v735, 7
        %v737 = vsub.s32 %v734, %v736
        %v738 = vrot.slane %v730, %v737
        %v740 = vunpack.c.l.s4 1934713408
        %v741 = vunpack.c.0.s8 %v740
        %v742 = vlaneseq
        %v743 = vshrl.u32 %v742, 7
        %v744 = vsub.s32 %v741, %v743
        %v745 = vrot.slane %v731, %v744
        %v746 = vcombine.high %v738, 0
        %v747 = vcombine.high %v745, 0
        %v750 = vpack.i.b16 %v738, %v704
        %v752 = vshrl.u32 %v704, 16
        %v753 = vshrl.u32 %v738, 16
        %v754 = vpack.i.b16 %v753, %v752
        %v758 = vpack.i.b16 %v746, %v712
        %v760 = vshrl.u32 %v712, 16
        %v761 = vshrl.u32 %v746, 16
        %v762 = vpack.i.b16 %v761, %v760
        %v766 = vpack.i.b16 %v745, %v711
        %v768 = vshrl.u32 %v711, 16
        %v769 = vshrl.u32 %v745, 16
        %v770 = vpack.i.b16 %v769, %v768
        %v774 = vpack.i.b16 %v747, %v713
        %v776 = vshrl.u32 %v713, 16
        %v777 = vshrl.u32 %v747, 16
        %v778 = vpack.i.b16 %v777, %v776
        %v780 = vcombine.low %v750, %v766
        %v782 = vunpack.c.l.s4 1983009808
        %v783 = vunpack.c.0.s8 %v782
        %v784 = vlaneseq
        %v785 = vshrl.u32 %v784, 7
        %v786 = vsub.s32 %v783, %v785
        %v787 = vrot.slane %v780, %v786
        %v788 = vcombine.low %v758, %v774
        %v790 = vunpack.c.l.s4 1983009808
        %v791 = vunpack.c.0.s8 %v790
        %v792 = vlaneseq
        %v793 = vshrl.u32 %v792, 7
        %v794 = vsub.s32 %v791, %v793
        %v795 = vrot.slane %v788, %v794
        %v796 = vcombine.low %v787, %v795
        %v798 = vunpack.c.l.s4 1934713408
        %v799 = vunpack.c.0.s8 %v798
        %v800 = vlaneseq
        %v801 = vshrl.u32 %v800, 7
        %v802 = vsub.s32 %v799, %v801
        %v803 = vrot.slane %v796, %v802
        %v804 = vcombine.high %v803, 0
        %v805 = vcombine.low %v754, %v770
        %v807 = vunpack.c.l.s4 1983009808
        %v808 = vunpack.c.0.s8 %v807
        %v809 = vlaneseq
        %v810 = vshrl.u32 %v809, 7
        %v811 = vsub.s32 %v808, %v810
        %v812 = vrot.slane %v805, %v811
        %v813 = vcombine.low %v762, %v778
        %v815 = vunpack.c.l.s4 1983009808
        %v816 = vunpack.c.0.s8 %v815
        %v817 = vlaneseq
        %v818 = vshrl.u32 %v817, 7
        %v819 = vsub.s32 %v816, %v818
        %v820 = vrot.slane %v813, %v819
        %v821 = vcombine.low %v812, %v820
        %v823 = vunpack.c.l.s4 1934713408
        %v824 = vunpack.c.0.s8 %v823
        %v825 = vlaneseq
        %v826 = vshrl.u32 %v825, 7
        %v827 = vsub.s32 %v824, %v826
        %v828 = vrot.slane %v821, %v827
        %v829 = vcombine.high %v828, 0
        %v832 = vpack.i.b16 %v828, %v803
        %v834 = vshrl.u32 %v803, 16
        %v835 = vshrl.u32 %v828, 16
        %v836 = vpack.i.b16 %v835, %v834
        %v840 = vpack.i.b16 %v829, %v804
        %v842 = vshrl.u32 %v804, 16
        %v843 = vshrl.u32 %v829, 16
        %v844 = vpack.i.b16 %v843, %v842
        %846 = vst.msk [vmem:[%s377] sm:$0xf] %vm659, %v832
        %847 = vst.msk [vmem:[%s377 + $0x4] sm:$0xf] %vm659, %v836
        %848 = vst.msk [vmem:[%s377 + $0x8] sm:$0xf] %vm659, %v840
        %849 = vst.msk [vmem:[%s377 + $0xc] sm:$0xf] %vm659, %v844
        %850 = vrot.lane.b32.xlu0 %v664, 64
        %v851 = vpop.permute.xlu0 %850
        %852 = vrot.lane.b32.xlu0 %v667, 64
        %v853 = vpop.permute.xlu0 %852
        %854 = vrot.lane.b32.xlu0 %v669, 64
        %v855 = vpop.permute.xlu0 %854
        %856 = vrot.lane.b32.xlu0 %v671, 64
        %v857 = vpop.permute.xlu0 %856
        %v860 = vunpack.c.l.s4 1983009808
        %v861 = vunpack.c.0.s8 %v860
        %v862 = vlaneseq
        %v863 = vshrl.u32 %v862, 7
        %v864 = vsub.s32 %v861, %v863
        %v865 = vrot.slane %v851, %v864
        %v868 = vunpack.c.l.s4 1983009808
        %v869 = vunpack.c.0.s8 %v868
        %v870 = vlaneseq
        %v871 = vshrl.u32 %v870, 7
        %v872 = vsub.s32 %v869, %v871
        %v873 = vrot.slane %v855, %v872
        %v874 = vcombine.low %v865, %v873
        %v875 = vcombine.high %v865, %v873
        %v877 = vunpack.c.l.s4 1934713408
        %v878 = vunpack.c.0.s8 %v877
        %v879 = vlaneseq
        %v880 = vshrl.u32 %v879, 7
        %v881 = vsub.s32 %v878, %v880
        %v882 = vrot.slane %v874, %v881
        %v884 = vunpack.c.l.s4 1934713408
        %v885 = vunpack.c.0.s8 %v884
        %v886 = vlaneseq
        %v887 = vshrl.u32 %v886, 7
        %v888 = vsub.s32 %v885, %v887
        %v889 = vrot.slane %v875, %v888
        %v890 = vcombine.high %v882, 0
        %v891 = vcombine.high %v889, 0
        %v894 = vunpack.c.l.s4 1983009808
        %v895 = vunpack.c.0.s8 %v894
        %v896 = vlaneseq
        %v897 = vshrl.u32 %v896, 7
        %v898 = vsub.s32 %v895, %v897
        %v899 = vrot.slane %v853, %v898
        %v902 = vunpack.c.l.s4 1983009808
        %v903 = vunpack.c.0.s8 %v902
        %v904 = vlaneseq
        %v905 = vshrl.u32 %v904, 7
        %v906 = vsub.s32 %v903, %v905
        %v907 = vrot.slane %v857, %v906
        %v908 = vcombine.low %v899, %v907
        %v909 = vcombine.high %v899, %v907
        %v911 = vunpack.c.l.s4 1934713408
        %v912 = vunpack.c.0.s8 %v911
        %v913 = vlaneseq
        %v914 = vshrl.u32 %v913, 7
        %v915 = vsub.s32 %v912, %v914
        %v916 = vrot.slane %v908, %v915
        %v918 = vunpack.c.l.s4 1934713408
        %v919 = vunpack.c.0.s8 %v918
        %v920 = vlaneseq
        %v921 = vshrl.u32 %v920, 7
        %v922 = vsub.s32 %v919, %v921
        %v923 = vrot.slane %v909, %v922
        %v924 = vcombine.high %v916, 0
        %v925 = vcombine.high %v923, 0
        %v928 = vpack.i.b16 %v916, %v882
        %v930 = vshrl.u32 %v882, 16
        %v931 = vshrl.u32 %v916, 16
        %v932 = vpack.i.b16 %v931, %v930
        %v936 = vpack.i.b16 %v924, %v890
        %v938 = vshrl.u32 %v890, 16
        %v939 = vshrl.u32 %v924, 16
        %v940 = vpack.i.b16 %v939, %v938
        %v944 = vpack.i.b16 %v923, %v889
        %v946 = vshrl.u32 %v889, 16
        %v947 = vshrl.u32 %v923, 16
        %v948 = vpack.i.b16 %v947, %v946
        %v952 = vpack.i.b16 %v925, %v891
        %v954 = vshrl.u32 %v891, 16
        %v955 = vshrl.u32 %v925, 16
        %v956 = vpack.i.b16 %v955, %v954
        %v958 = vcombine.low %v928, %v944
        %v960 = vunpack.c.l.s4 1983009808
        %v961 = vunpack.c.0.s8 %v960
        %v962 = vlaneseq
        %v963 = vshrl.u32 %v962, 7
        %v964 = vsub.s32 %v961, %v963
        %v965 = vrot.slane %v958, %v964
        %v966 = vcombine.low %v936, %v952
        %v968 = vunpack.c.l.s4 1983009808
        %v969 = vunpack.c.0.s8 %v968
        %v970 = vlaneseq
        %v971 = vshrl.u32 %v970, 7
        %v972 = vsub.s32 %v969, %v971
        %v973 = vrot.slane %v966, %v972
        %v974 = vcombine.low %v965, %v973
        %v976 = vunpack.c.l.s4 1934713408
        %v977 = vunpack.c.0.s8 %v976
        %v978 = vlaneseq
        %v979 = vshrl.u32 %v978, 7
        %v980 = vsub.s32 %v977, %v979
        %v981 = vrot.slane %v974, %v980
        %v982 = vcombine.high %v981, 0
        %v983 = vcombine.low %v932, %v948
        %v985 = vunpack.c.l.s4 1983009808
        %v986 = vunpack.c.0.s8 %v985
        %v987 = vlaneseq
        %v988 = vshrl.u32 %v987, 7
        %v989 = vsub.s32 %v986, %v988
        %v990 = vrot.slane %v983, %v989
        %v991 = vcombine.low %v940, %v956
        %v993 = vunpack.c.l.s4 1983009808
        %v994 = vunpack.c.0.s8 %v993
        %v995 = vlaneseq
        %v996 = vshrl.u32 %v995, 7
        %v997 = vsub.s32 %v994, %v996
        %v998 = vrot.slane %v991, %v997
        %v999 = vcombine.low %v990, %v998
        %v1001 = vunpack.c.l.s4 1934713408
        %v1002 = vunpack.c.0.s8 %v1001
        %v1003 = vlaneseq
        %v1004 = vshrl.u32 %v1003, 7
        %v1005 = vsub.s32 %v1002, %v1004
        %v1006 = vrot.slane %v999, %v1005
        %v1007 = vcombine.high %v1006, 0
        %v1010 = vpack.i.b16 %v1006, %v981
        %v1012 = vshrl.u32 %v981, 16
        %v1013 = vshrl.u32 %v1006, 16
        %v1014 = vpack.i.b16 %v1013, %v1012
        %v1018 = vpack.i.b16 %v1007, %v982
        %v1020 = vshrl.u32 %v982, 16
        %v1021 = vshrl.u32 %v1007, 16
        %v1022 = vpack.i.b16 %v1021, %v1020
        %1024 = vst.msk [vmem:[%s384] sm:$0xf] %vm659, %v1010
        %1025 = vst.msk [vmem:[%s384 + $0x4] sm:$0xf] %vm659, %v1014
        %1026 = vst.msk [vmem:[%s384 + $0x8] sm:$0xf] %vm659, %v1018
        %1027 = vst.msk [vmem:[%s384 + $0xc] sm:$0xf] %vm659, %v1022
        %s1028 = sand.u32 %s164, 1
        %s1029 = scalar_lea.sflag [#allocation4], %s1028
        %s1030 = sand.u32 %s164, 1
        %s1031 = smul.addr %s1030, 16
        %s1032 = scalar_lea.vmem [#allocation11], %s1031
        %s1033 = sand.u32 %s30, 1
        %s1034 = scalar_lea.sflag [#allocation13], %s1033
        %s1035 = sand.u32 %s192, 1
        %s1036 = smul.addr %s1035, 16
        %s1037 = scalar_lea.vmem [#allocation12], %s1036
        %s1038 = sand.u32 %s30, 1
        %s1039 = scalar_lea.sflag [#allocation13], %s1038
        %s1040 = sand.u32 %s220, 1
        %s1041 = smul.addr %s1040, 16
        %s1042 = scalar_lea.vmem [#allocation14], %s1041
        // Predicated region
        $region61: #{tpu_custom_call.1} parent=39 // pred_check
          %p1043 = pneg %p174
        $region62: #{tpu_custom_call.1} parent=39 // pred_check_branch
          %1045 = sbr.rel (%p1043) target = $region64
        $region63: #{tpu_custom_call.1} parent=39 // pred_region
          %s1047 = ssub.s32 256, 256
          %1048 = vsyncadd %s1029, %s1047
          %s1049 = smul.addr %s34, 4
          %s1050 = sadd.s32 %s35, %s1049
          %s1051 = smul.addr %s1050, 64
          %s1052 = scalar_lea.hbm %s5, %s1051
          %s1053 = sshll.u32 %s1032, 4
          %s1054 = int_to_ptr.vmem [resolvable:$true] %s1053
          %1059 = dma.vmem_to_hbm [thread:$0]  %s1054, 256, %s1052, %s1029, 64, 64, 4
        $region64: #{tpu_custom_call.1} parent=39 // pred_fallthru
          _
        // Predicated region
        $region65: #{tpu_custom_call.1} parent=39 // pred_check
          %p1060 = pneg %p202
        $region66: #{tpu_custom_call.1} parent=39 // pred_check_branch
          %1062 = sbr.rel (%p1060) target = $region68
        $region67: #{tpu_custom_call.1} parent=39 // pred_region
          %s1064 = ssub.s32 256, 256
          %1065 = vsyncadd %s1034, %s1064
          %s1066 = smul.addr %s34, 4
          %s1067 = sadd.s32 %s35, %s1066
          %s1068 = smul.addr %s1067, 64
          %s1069 = scalar_lea.hbm %s6, %s1068
          %s1070 = sshll.u32 %s1037, 4
          %s1071 = int_to_ptr.vmem [resolvable:$true] %s1070
          %1076 = dma.vmem_to_hbm [thread:$0]  %s1071, 256, %s1069, %s1034, 64, 64, 4
        $region68: #{tpu_custom_call.1} parent=39 // pred_fallthru
          _
        // Predicated region
        $region69: #{tpu_custom_call.1} parent=39 // pred_check
          %p1077 = pneg %p230
        $region70: #{tpu_custom_call.1} parent=39 // pred_check_branch
          %1079 = sbr.rel (%p1077) target = $region72
        $region71: #{tpu_custom_call.1} parent=39 // pred_region
          %s1081 = ssub.s32 256, 256
          %1082 = vsyncadd %s1039, %s1081
          %s1083 = smul.addr %s34, 4
          %s1084 = sadd.s32 %s35, %s1083
          %s1085 = smul.addr %s1084, 64
          %s1086 = scalar_lea.hbm %s7, %s1085
          %s1087 = sshll.u32 %s1042, 4
          %s1088 = int_to_ptr.vmem [resolvable:$true] %s1087
          %1093 = dma.vmem_to_hbm [thread:$0]  %s1088, 256, %s1086, %s1039, 64, 64, 4
        $region72: #{tpu_custom_call.1} parent=39 // pred_fallthru
          _
      $region40: #{tpu_custom_call.1} parent=5 // pred_fallthru
        _
      %p1094 = scmp.le.s32.totalorder 2, %s25
      // Predicated region
      $region73: #{tpu_custom_call.1} parent=5 // pred_check
        %p1095 = pneg %p1094
      $region74: #{tpu_custom_call.1} parent=5 // pred_check_branch
        %1097 = sbr.rel (%p1095) target = $region76
      $region75: #{tpu_custom_call.1} parent=5 // pred_region
        %s1098 = ssub.s32 %s25, 2
        // Predicated region
        $region77: #{tpu_custom_call.1} parent=75 // pred_check
          %p1099 = pneg %p180
        $region78: #{tpu_custom_call.1} parent=75 // pred_check_branch
          %1101 = sbr.rel (%p1099) target = $region80
        $region79: #{tpu_custom_call.1} parent=75 // pred_region
          %s1102 = sand.u32 %s165, 1
          %s1103 = scalar_lea.sflag [#allocation4], %s1102
          %s1104 = sand.u32 %s165, 1
          %s1105 = smul.addr %s1104, 16
          %s1106 = scalar_lea.vmem [#allocation11], %s1105
          %1107 = dma.done %s1103, 256
        $region80: #{tpu_custom_call.1} parent=75 // pred_fallthru
          _
        // Predicated region
        $region81: #{tpu_custom_call.1} parent=75 // pred_check
          %p1108 = pneg %p208
        $region82: #{tpu_custom_call.1} parent=75 // pred_check_branch
          %1110 = sbr.rel (%p1108) target = $region84
        $region83: #{tpu_custom_call.1} parent=75 // pred_region
          %s1111 = sand.u32 %s31, 1
          %s1112 = scalar_lea.sflag [#allocation13], %s1111
          %s1113 = sand.u32 %s193, 1
          %s1114 = smul.addr %s1113, 16
          %s1115 = scalar_lea.vmem [#allocation12], %s1114
          %1116 = dma.done %s1112, 256
        $region84: #{tpu_custom_call.1} parent=75 // pred_fallthru
          _
        // Predicated region
        $region85: #{tpu_custom_call.1} parent=75 // pred_check
          %p1117 = pneg %p236
        $region86: #{tpu_custom_call.1} parent=75 // pred_check_branch
          %1119 = sbr.rel (%p1117) target = $region88
        $region87: #{tpu_custom_call.1} parent=75 // pred_region
          %s1120 = sand.u32 %s31, 1
          %s1121 = scalar_lea.sflag [#allocation13], %s1120
          %s1122 = sand.u32 %s221, 1
          %s1123 = smul.addr %s1122, 16
          %s1124 = scalar_lea.vmem [#allocation14], %s1123
          %1125 = dma.done %s1121, 256
        $region88: #{tpu_custom_call.1} parent=75 // pred_fallthru
          _
      $region76: #{tpu_custom_call.1} parent=5 // pred_fallthru
        _
    $region6: #{tpu_custom_call.1} parent=1 // loop_footer
      %s29 = sadd.s32 1, %s25
    $region7: #{tpu_custom_call.1} parent=1 // loop_footer_branch
      %24 = sbr.rel target = $region3
    $region8: #{tpu_custom_call.1} parent=1 // loop_exit
      _
    %1126 = vsyncpa [#allocation3], 1
    %s1127 = scalar_lea.sflag [#allocation3], 1
    %1128 = vsyncpa %s1127, 1
    %1129 = vsyncpa [#allocation6], 1
    %1130 = vsyncpa [#allocation9], 1
    %1131 = vsyncpa [#allocation4], 1
    %s1132 = scalar_lea.sflag [#allocation4], 1
    %1133 = vsyncpa %s1132, 1
    %1134 = vsyncpa [#allocation13], 1
    %s1135 = scalar_lea.sflag [#allocation13], 1
    %1136 = vsyncpa %s1135, 1

</llo_original>
